<compile_context>
chip_gen: v7x
topology: tpu7x:2x2x1
jax: 0.10.0
libtpu: 0.0.40
codegen_flags: <defaults>
</compile_context>

<pallas_src>
import numpy as np
from functools import partial

import jax
import jax.numpy as jnp
from jax.experimental import pallas as pl
from jax.experimental.pallas import tpu as pltpu

HIGHEST = jax.lax.Precision.HIGHEST
EPS = 1e-6
NEG = -float(np.finfo(np.float32).max)
INV_SQRT2 = 0.7071067811865476


def _round_up(n, m):
    return ((n + m - 1) // m) * m


def _layernorm_lastdim(x, w, b):
    # PyTorch channels_first LayerNorm (mean/var over channels); channels are last here.
    u = jnp.mean(x, axis=-1, keepdims=True)
    xc = x - u
    var = jnp.mean(xc * xc, axis=-1, keepdims=True)
    return (xc * jax.lax.rsqrt(var + EPS)) * w + b


# ---------------- Kernel A: channels_first LayerNorm + fused QKV matmul ----------------
def qkv_kernel(x_ref, lnw_ref, lnb_ref, w_ref, b_ref, out_ref):
    xn = _layernorm_lastdim(x_ref[...], lnw_ref[...], lnb_ref[...])
    qkv = jnp.dot(xn.astype(jnp.bfloat16), w_ref[...],
                  preferred_element_type=jnp.float32) + b_ref[...]
    out_ref[...] = qkv.astype(jnp.bfloat16)


# -------- Kernel B: windowed attention, two-pass softmax over the Wn static offsets ----
def make_attn_kernel(Wn):
    def kernel(q_ref, ku_ref, vu_ref, mb_ref, hh_ref, z_ref):
        q = q_ref[...].astype(jnp.float32)         # scale already folded into wq/bq
        hh = hh_ref[...]                           # (C, C) block-diag "same head", bf16
        # pass 1: masked per-head scores + running max
        scores = []
        m = jnp.full(q.shape, NEG, jnp.float32)
        for d in range(Wn):                        # static unroll, Wn = 7
            kd = ku_ref[d].astype(jnp.float32)
            sd = jnp.dot((q * kd).astype(jnp.bfloat16), hh,
                         preferred_element_type=jnp.float32) + mb_ref[d]
            scores.append(sd)
            m = jnp.maximum(m, sd)
        # pass 2: one exp per offset + weighted accumulate
        l = jnp.zeros(q.shape, jnp.float32)
        acc = jnp.zeros(q.shape, jnp.float32)
        for d in range(Wn):
            p = jnp.exp(scores[d] - m)
            l = l + p
            acc = acc + p * vu_ref[d].astype(jnp.float32)
        z_ref[...] = (acc * pl.reciprocal(l, approx=True)).astype(jnp.bfloat16)
    return kernel


# -------- Kernel C: out-linear + residual + LayerNorm + MLP(GELU) + residual -----------
def block_kernel(zw_ref, x_ref, wl_ref, bl_ref, lnw_ref, lnb_ref,
                 w1_ref, b1_ref, w2_ref, b2_ref, out_ref):
    y = jnp.dot(zw_ref[...], wl_ref[...],
                preferred_element_type=jnp.float32) + bl_ref[...]
    z1 = y + x_ref[...]                                      # residual with original x
    zn = _layernorm_lastdim(z1, lnw_ref[...], lnb_ref[...])
    h = jnp.dot(zn.astype(jnp.bfloat16), w1_ref[...],
                preferred_element_type=jnp.float32) + b1_ref[...]
    h = 0.5 * h * (1.0 + jax.lax.erf(h * INV_SQRT2))         # exact GELU (nn.GELU default)
    h = jnp.dot(h.astype(jnp.bfloat16), w2_ref[...],
                preferred_element_type=jnp.float32) + b2_ref[...]
    out_ref[...] = h + z1                                    # second residual


# ----------------------------- wrapper -----------------------------
@partial(jax.jit, static_argnames=("heads", "window"))
def transformer_block_pallas(x, mask, p, heads=8, window=7):
    B, C, S = x.shape
    NH = heads
    CPH = C // NH
    hw = (window - 1) // 2
    Wn = window
    BS = B * S
    C3, C4 = 3 * C, 4 * C
    scale = CPH ** -0.5
    bf16 = jnp.bfloat16

    # row tile: multiple of 16 (bf16 sublane packing), capped; rows padded to a multiple.
    TM = min(512, _round_up(BS, 16))
    BS_pad = _round_up(BS, TM)
    nb = BS_pad // TM
    pad_rows = BS_pad - BS

    cparams = pltpu.CompilerParams(dimension_semantics=("parallel",))

    # (B, C, S) -> batch-folded (B*S, C), zero-padded rows to BS_pad
    xT = jnp.transpose(x, (0, 2, 1)).astype(jnp.float32).reshape(BS, C)
    xp = jnp.pad(xT, ((0, pad_rows), (0, 0)))

    # weights prepared once in the wrapper: bf16, fused QKV, 1/sqrt(cph) folded into Q
    ln_w, ln_b = p["ln_w"], p["ln_b"]
    wqkv = jnp.concatenate([p["wq"] * scale, p["wk"], p["wv"]], axis=1).astype(bf16)
    bqkv = jnp.concatenate([p["bq"] * scale, p["bk"], p["bv"]], axis=1)
    wl, w1, w2 = p["wl"].astype(bf16), p["w1"].astype(bf16), p["w2"].astype(bf16)
    bl, b1, b2 = p["bl"], p["b1"], p["b2"]

    # block-diagonal "same head" matrix: (q*k) @ hh sums products within a head and
    # broadcasts the per-head score back across that head's channels in one matmul.
    hh = (jnp.arange(C)[:, None] // CPH == jnp.arange(C)[None, :] // CPH).astype(bf16)

    row2 = lambda i: (i, 0)
    cst2 = lambda i: (0, 0)
    row3 = lambda i: (0, i, 0)

    # -------- 1) LayerNorm + fused QKV --------
    qkv = pl.pallas_call(
        qkv_kernel,
        grid=(nb,),
        in_specs=[pl.BlockSpec((TM, C), row2),
                  pl.BlockSpec((1, C), cst2),
                  pl.BlockSpec((1, C), cst2),
                  pl.BlockSpec((C, C3), cst2),
                  pl.BlockSpec((1, C3), cst2)],
        out_specs=pl.BlockSpec((TM, C3), row2),
        out_shape=jax.ShapeDtypeStruct((BS_pad, C3), bf16),
        compiler_params=cparams,
    )(xp, ln_w, ln_b, wqkv, bqkv)

    q, k, v = qkv[:, :C], qkv[:, C:2 * C], qkv[:, 2 * C:]

    # shifted K/V slabs for the Wn window offsets and additive mask bias, built once in
    # XLA (no in-kernel sublane-unaligned slices). The mask (padded with False at the
    # per-batch sequence ends) also kills cross-batch windows of the folded layout.
    kp = jnp.pad(k, ((hw, hw), (0, 0)))
    vp = jnp.pad(v, ((hw, hw), (0, 0)))
    ku = jnp.stack([kp[d:d + BS_pad] for d in range(Wn)], axis=0)   # (Wn, BS_pad, C)
    vu = jnp.stack([vp[d:d + BS_pad] for d in range(Wn)], axis=0)

    maskp = jnp.pad(mask, ((0, 0), (hw, hw)), constant_values=False)
    M = jnp.stack([maskp[:, d:d + S] for d in range(Wn)], axis=0).reshape(Wn, BS)
    M = jnp.pad(M, ((0, 0), (0, pad_rows)), constant_values=False)
    mb = jnp.where(M, 0.0, NEG).astype(jnp.float32)[:, :, None]     # (Wn, BS_pad, 1)

    # -------- 2) windowed attention --------
    z = pl.pallas_call(
        make_attn_kernel(Wn),
        grid=(nb,),
        in_specs=[pl.BlockSpec((TM, C), row2),
                  pl.BlockSpec((Wn, TM, C), row3),
                  pl.BlockSpec((Wn, TM, C), row3),
                  pl.BlockSpec((Wn, TM, 1), row3),
                  pl.BlockSpec((C, C), cst2)],
        out_specs=pl.BlockSpec((TM, C), row2),
        out_shape=jax.ShapeDtypeStruct((BS_pad, C), bf16),
        compiler_params=cparams,
    )(q, ku, vu, mb, hh)

    # TODO(synk): torch glue z.transpose(1,2).reshape(B,-1,C) is a sub-(8,128) head<->seq
    # element scramble with no cheap Mosaic relayout; kept as one tiny XLA transpose (bf16).
    zs = z[:BS].reshape(B, S, NH, CPH).transpose(0, 2, 1, 3).reshape(BS, C)
    zw = jnp.pad(zs, ((0, pad_rows), (0, 0)))

    # -------- 3) out-linear + residual + LayerNorm + MLP + residual --------
    out = pl.pallas_call(
        block_kernel,
        grid=(nb,),
        in_specs=[pl.BlockSpec((TM, C), row2),
                  pl.BlockSpec((TM, C), row2),
                  pl.BlockSpec((C, C), cst2),
                  pl.BlockSpec((1, C), cst2),
                  pl.BlockSpec((1, C), cst2),
                  pl.BlockSpec((1, C), cst2),
                  pl.BlockSpec((C, C4), cst2),
                  pl.BlockSpec((1, C4), cst2),
                  pl.BlockSpec((C4, C), cst2),
                  pl.BlockSpec((1, C), cst2)],
        out_specs=pl.BlockSpec((TM, C), row2),
        out_shape=jax.ShapeDtypeStruct((BS_pad, C), jnp.float32),
        compiler_params=cparams,
    )(zw, xp, wl, bl, ln_w, ln_b, w1, b1, w2, b2)

    return jnp.transpose(out[:BS].reshape(B, S, C), (0, 2, 1))      # back to (B, C, S)


# ----------------------------- pure-JAX reference -----------------------------
def transformer_block_ref(x, mask, p, heads=8, window=7):
    B, C, S = x.shape
    NH, CPH, hw, Wn = heads, C // heads, (window - 1) // 2, window
    mm = lambda a, b: jnp.matmul(a, b, precision=HIGHEST)

    def norm_cf(t):
        u = t.mean(axis=1, keepdims=True)
        s = ((t - u) ** 2).mean(axis=1, keepdims=True)
        t = (t - u) / jnp.sqrt(s + EPS)
        return p["ln_w"][0][None, :, None] * t + p["ln_b"][0][None, :, None]

    z1 = norm_cf(x)
    xt = jnp.transpose(z1, (0, 2, 1))
    q = (mm(xt, p["wq"]) + p["bq"]).reshape(B, S, NH, CPH) * CPH ** -0.5
    k = (mm(xt, p["wk"]) + p["bk"]).reshape(B, S, NH, CPH)
    v = (mm(xt, p["wv"]) + p["bv"]).reshape(B, S, NH, CPH)
    kp = jnp.pad(k, ((0, 0), (hw, hw), (0, 0), (0, 0)))
    vp = jnp.pad(v, ((0, 0), (hw, hw), (0, 0), (0, 0)))
    ku = jnp.transpose(jnp.stack([kp[:, d:d + S] for d in range(Wn)], axis=1), (0, 1, 3, 4, 2))
    vu = jnp.transpose(jnp.stack([vp[:, d:d + S] for d in range(Wn)], axis=1), (0, 1, 3, 4, 2))
    A = jnp.einsum('bqnh,bknhq->bqkn', q, ku, precision=HIGHEST)
    maskp = jnp.pad(mask, ((0, 0), (hw, hw)), constant_values=False)
    mu = jnp.transpose(jnp.stack([maskp[:, d:d + S] for d in range(Wn)], axis=1), (0, 2, 1))[..., None]
    A = jnp.where(mu, A, NEG)
    A = jax.nn.softmax(A, axis=-2)
    z = jnp.einsum('bqkn,bknhq->bqnh', A, vu, precision=HIGHEST)
    z = jnp.transpose(z, (0, 2, 1, 3)).reshape(B, S, NH * CPH)
    z = mm(z, p["wl"]) + p["bl"]
    z1 = jnp.transpose(z, (0, 2, 1)) + x
    z2 = jnp.transpose(norm_cf(z1), (0, 2, 1))
    h = mm(z2, p["w1"]) + p["b1"]
    h = 0.5 * h * (1.0 + jax.lax.erf(h * INV_SQRT2))
    z2 = mm(h, p["w2"]) + p["b2"]
    return jnp.transpose(z2, (0, 2, 1)) + z1


def init_params(key, C):
    ks = jax.random.split(key, 14)
    w = lambda k, shape, s=0.1: jax.random.normal(k, shape, jnp.float32) * s
    return {
        "wq": w(ks[0], (C, C)), "bq": w(ks[1], (1, C), 0.02),
        "wk": w(ks[2], (C, C)), "bk": w(ks[3], (1, C), 0.02),
        "wv": w(ks[4], (C, C)), "bv": w(ks[5], (1, C), 0.02),
        "ln_w": 1.0 + w(ks[6], (1, C), 0.05), "ln_b": w(ks[7], (1, C), 0.02),
        "wl": w(ks[8], (C, C)), "bl": w(ks[9], (1, C), 0.02),
        "w1": w(ks[10], (C, 4 * C)), "b1": w(ks[11], (1, 4 * C), 0.02),
        "w2": w(ks[12], (4 * C, C)), "b2": w(ks[13], (1, C), 0.02),
    }


if __name__ == "__main__":
    B, C, S = 2, 32, 16
    heads, window = 8, 7

    key = jax.random.PRNGKey(0)
    kx, kparam = jax.random.split(key)
    x = jax.random.normal(kx, (B, C, S), jnp.float32)
    mask = jnp.ones((B, S), dtype=bool).at[1, S - 2:].set(False)
    params = init_params(kparam, C)

    out = transformer_block_pallas(x, mask, params, heads=heads, window=window)
    out = jax.block_until_ready(out)

    ref = transformer_block_ref(x, mask, params, heads=heads, window=window)
    assert out.shape == (B, C, S)
    if not np.allclose(np.asarray(out), np.asarray(ref), rtol=2e-2, atol=2e-2):
        raise AssertionError("Pallas output does not match JAX reference")
    print("KERNEL_OK")
</pallas_src>

<mosaic_0001>
module attributes {stable_mosaic.version = 11 : i64} {
  func.func @qkv_kernel(%arg0: i32, %arg1: memref<32x32xf32, #tpu.memory_space<vmem>>, %arg2: memref<1x32xf32, #tpu.memory_space<vmem>>, %arg3: memref<1x32xf32, #tpu.memory_space<vmem>>, %arg4: memref<32x96xbf16, #tpu.memory_space<vmem>>, %arg5: memref<1x96xf32, #tpu.memory_space<vmem>>, %arg6: memref<32x96xbf16, #tpu.memory_space<vmem>>) attributes {dimension_semantics = [#tpu.dimension_semantics<parallel>], iteration_bounds = array<i64: 1>, scalar_prefetch = 0 : i64, scratch_operands = 0 : i64, tpu.core_type = #tpu.core_type<tc>, window_params = [{transform_indices = @transform_0, window_bounds = array<i64: 32, 32>}, {pipeline_mode = #tpu.pipeline_mode<synchronous>, transform_indices = @transform_1, window_bounds = array<i64: 1, 32>}, {pipeline_mode = #tpu.pipeline_mode<synchronous>, transform_indices = @transform_2, window_bounds = array<i64: 1, 32>}, {pipeline_mode = #tpu.pipeline_mode<synchronous>, transform_indices = @transform_3, window_bounds = array<i64: 32, 96>}, {pipeline_mode = #tpu.pipeline_mode<synchronous>, transform_indices = @transform_4, window_bounds = array<i64: 1, 96>}, {transform_indices = @transform_5, window_bounds = array<i64: 32, 96>}]} {
    %c0 = arith.constant 0 : index
    %c0_0 = arith.constant 0 : index
    %0 = vector.load %arg1[%c0, %c0_0] : memref<32x32xf32, #tpu.memory_space<vmem>>, vector<32x32xf32>
    %c0_1 = arith.constant 0 : index
    %c0_2 = arith.constant 0 : index
    %1 = vector.load %arg2[%c0_1, %c0_2] : memref<1x32xf32, #tpu.memory_space<vmem>>, vector<1x32xf32>
    %c0_3 = arith.constant 0 : index
    %c0_4 = arith.constant 0 : index
    %2 = vector.load %arg3[%c0_3, %c0_4] : memref<1x32xf32, #tpu.memory_space<vmem>>, vector<1x32xf32>
    %cst = arith.constant dense<0.000000e+00> : vector<32xf32>
    %3 = vector.multi_reduction <add>, %0, %cst [1] : vector<32x32xf32> to vector<32xf32>
    %4 = vector.shape_cast %3 : vector<32xf32> to vector<32x1xf32>
    %cst_5 = arith.constant 3.200000e+01 : f32
    %5 = vector.broadcast %cst_5 : f32 to vector<32x1xf32>
    %6 = arith.divf %4, %5 : vector<32x1xf32>
    %7 = vector.broadcast %6 : vector<32x1xf32> to vector<32x32xf32>
    %8 = arith.subf %0, %7 : vector<32x32xf32>
    %9 = arith.mulf %8, %8 : vector<32x32xf32>
    %cst_6 = arith.constant dense<0.000000e+00> : vector<32xf32>
    %10 = vector.multi_reduction <add>, %9, %cst_6 [1] : vector<32x32xf32> to vector<32xf32>
    %11 = vector.shape_cast %10 : vector<32xf32> to vector<32x1xf32>
    %cst_7 = arith.constant 3.200000e+01 : f32
    %12 = vector.broadcast %cst_7 : f32 to vector<32x1xf32>
    %13 = arith.divf %11, %12 : vector<32x1xf32>
    %cst_8 = arith.constant 9.99999997E-7 : f32
    %14 = vector.broadcast %cst_8 : f32 to vector<32x1xf32>
    %15 = arith.addf %13, %14 : vector<32x1xf32>
    %16 = math.rsqrt %15 : vector<32x1xf32>
    %17 = vector.broadcast %16 : vector<32x1xf32> to vector<32x32xf32>
    %18 = arith.mulf %8, %17 : vector<32x32xf32>
    %19 = vector.broadcast %1 : vector<1x32xf32> to vector<32x32xf32>
    %20 = arith.mulf %18, %19 : vector<32x32xf32>
    %21 = vector.broadcast %2 : vector<1x32xf32> to vector<32x32xf32>
    %22 = arith.addf %20, %21 : vector<32x32xf32>
    %23 = arith.truncf %22 : vector<32x32xf32> to vector<32x32xbf16>
    %c0_9 = arith.constant 0 : index
    %c0_10 = arith.constant 0 : index
    %24 = vector.load %arg4[%c0_9, %c0_10] : memref<32x96xbf16, #tpu.memory_space<vmem>>, vector<32x96xbf16>
    %cst_11 = arith.constant dense<0.000000e+00> : vector<32x96xf32>
    %25 = tpu.matmul %23, %24, %cst_11 {dimension_numbers = #tpu.dot_dimension_numbers<[1], [0], [0], [1], [0, 0, 1, 1], [], []>} : vector<32x32xbf16>, vector<32x96xbf16>, vector<32x96xf32> -> vector<32x96xf32>
    %c0_12 = arith.constant 0 : index
    %c0_13 = arith.constant 0 : index
    %26 = vector.load %arg5[%c0_12, %c0_13] : memref<1x96xf32, #tpu.memory_space<vmem>>, vector<1x96xf32>
    %27 = vector.broadcast %26 : vector<1x96xf32> to vector<32x96xf32>
    %28 = arith.addf %25, %27 : vector<32x96xf32>
    %29 = arith.truncf %28 : vector<32x96xf32> to vector<32x96xbf16>
    %c0_14 = arith.constant 0 : index
    %c0_15 = arith.constant 0 : index
    %30 = vector.load %arg6[%c0_14, %c0_15] : memref<32x96xbf16, #tpu.memory_space<vmem>>, vector<32x96xbf16>
    tpu.vector_store %arg6[%c0_14, %c0_15], %29 {strides = array<i32>} : memref<32x96xbf16, #tpu.memory_space<vmem>>, vector<32x96xbf16>,
    return
  }
  func.func @transform_0(%arg0: i32) -> (i32, i32) {
    %c0_i32 = arith.constant 0 : i32
    %c0_i32_0 = arith.constant 0 : i32
    return %arg0, %c0_i32 : i32, i32
  }
  func.func @transform_1(%arg0: i32) -> (i32, i32) {
    %c0_i32 = arith.constant 0 : i32
    %c0_i32_0 = arith.constant 0 : i32
    %c0_i32_1 = arith.constant 0 : i32
    return %c0_i32, %c0_i32_0 : i32, i32
  }
  func.func @transform_2(%arg0: i32) -> (i32, i32) {
    %c0_i32 = arith.constant 0 : i32
    %c0_i32_0 = arith.constant 0 : i32
    %c0_i32_1 = arith.constant 0 : i32
    return %c0_i32, %c0_i32_0 : i32, i32
  }
  func.func @transform_3(%arg0: i32) -> (i32, i32) {
    %c0_i32 = arith.constant 0 : i32
    %c0_i32_0 = arith.constant 0 : i32
    %c0_i32_1 = arith.constant 0 : i32
    return %c0_i32, %c0_i32_0 : i32, i32
  }
  func.func @transform_4(%arg0: i32) -> (i32, i32) {
    %c0_i32 = arith.constant 0 : i32
    %c0_i32_0 = arith.constant 0 : i32
    %c0_i32_1 = arith.constant 0 : i32
    return %c0_i32, %c0_i32_0 : i32, i32
  }
  func.func @transform_5(%arg0: i32) -> (i32, i32) {
    %c0_i32 = arith.constant 0 : i32
    %c0_i32_0 = arith.constant 0 : i32
    return %arg0, %c0_i32 : i32, i32
  }
}

module attributes {stable_mosaic.version = 11 : i64} {
  func.func @kernel(%arg0: i32, %arg1: memref<32x32xbf16, #tpu.memory_space<vmem>>, %arg2: memref<7x32x32xbf16, #tpu.memory_space<vmem>>, %arg3: memref<7x32x32xbf16, #tpu.memory_space<vmem>>, %arg4: memref<7x32x1xf32, #tpu.memory_space<vmem>>, %arg5: memref<32x32xbf16, #tpu.memory_space<vmem>>, %arg6: memref<32x32xbf16, #tpu.memory_space<vmem>>) attributes {dimension_semantics = [#tpu.dimension_semantics<parallel>], iteration_bounds = array<i64: 1>, scalar_prefetch = 0 : i64, scratch_operands = 0 : i64, tpu.core_type = #tpu.core_type<tc>, window_params = [{transform_indices = @transform_0, window_bounds = array<i64: 32, 32>}, {transform_indices = @transform_1, window_bounds = array<i64: 7, 32, 32>}, {transform_indices = @transform_2, window_bounds = array<i64: 7, 32, 32>}, {transform_indices = @transform_3, window_bounds = array<i64: 7, 32, 1>}, {pipeline_mode = #tpu.pipeline_mode<synchronous>, transform_indices = @transform_4, window_bounds = array<i64: 32, 32>}, {transform_indices = @transform_5, window_bounds = array<i64: 32, 32>}]} {
    %c0 = arith.constant 0 : index
    %c0_0 = arith.constant 0 : index
    %0 = vector.load %arg1[%c0, %c0_0] : memref<32x32xbf16, #tpu.memory_space<vmem>>, vector<32x32xbf16>
    %1 = arith.extf %0 : vector<32x32xbf16> to vector<32x32xf32>
    %c0_1 = arith.constant 0 : index
    %c0_2 = arith.constant 0 : index
    %2 = vector.load %arg5[%c0_1, %c0_2] : memref<32x32xbf16, #tpu.memory_space<vmem>>, vector<32x32xbf16>
    %cst = arith.constant -3.40282347E+38 : f32
    %3 = vector.broadcast %cst : f32 to vector<32x32xf32>
    %c0_3 = arith.constant 0 : index
    %c0_4 = arith.constant 0 : index
    %c0_5 = arith.constant 0 : index
    %4 = vector.load %arg2[%c0_3, %c0_4, %c0_5] : memref<7x32x32xbf16, #tpu.memory_space<vmem>>, vector<1x32x32xbf16>
    %5 = vector.shape_cast %4 : vector<1x32x32xbf16> to vector<32x32xbf16>
    %6 = arith.extf %5 : vector<32x32xbf16> to vector<32x32xf32>
    %7 = arith.mulf %1, %6 : vector<32x32xf32>
    %8 = arith.truncf %7 : vector<32x32xf32> to vector<32x32xbf16>
    %cst_6 = arith.constant dense<0.000000e+00> : vector<32x32xf32>
    %9 = tpu.matmul %8, %2, %cst_6 {dimension_numbers = #tpu.dot_dimension_numbers<[1], [0], [0], [1], [0, 0, 1, 1], [], []>} : vector<32x32xbf16>, vector<32x32xbf16>, vector<32x32xf32> -> vector<32x32xf32>
    %c0_7 = arith.constant 0 : index
    %c0_8 = arith.constant 0 : index
    %c0_9 = arith.constant 0 : index
    %10 = vector.load %arg4[%c0_7, %c0_8, %c0_9] : memref<7x32x1xf32, #tpu.memory_space<vmem>>, vector<1x32x1xf32>
    %11 = vector.shape_cast %10 : vector<1x32x1xf32> to vector<32x1xf32>
    %12 = vector.broadcast %11 : vector<32x1xf32> to vector<32x32xf32>
    %13 = arith.addf %9, %12 : vector<32x32xf32>
    %14 = arith.maximumf %3, %13 : vector<32x32xf32>
    %c1 = arith.constant 1 : index
    %c0_10 = arith.constant 0 : index
    %c0_11 = arith.constant 0 : index
    %15 = vector.load %arg2[%c1, %c0_10, %c0_11] : memref<7x32x32xbf16, #tpu.memory_space<vmem>>, vector<1x32x32xbf16>
    %16 = vector.shape_cast %15 : vector<1x32x32xbf16> to vector<32x32xbf16>
    %17 = arith.extf %16 : vector<32x32xbf16> to vector<32x32xf32>
    %18 = arith.mulf %1, %17 : vector<32x32xf32>
    %19 = arith.truncf %18 : vector<32x32xf32> to vector<32x32xbf16>
    %cst_12 = arith.constant dense<0.000000e+00> : vector<32x32xf32>
    %20 = tpu.matmul %19, %2, %cst_12 {dimension_numbers = #tpu.dot_dimension_numbers<[1], [0], [0], [1], [0, 0, 1, 1], [], []>} : vector<32x32xbf16>, vector<32x32xbf16>, vector<32x32xf32> -> vector<32x32xf32>
    %c1_13 = arith.constant 1 : index
    %c0_14 = arith.constant 0 : index
    %c0_15 = arith.constant 0 : index
    %21 = vector.load %arg4[%c1_13, %c0_14, %c0_15] : memref<7x32x1xf32, #tpu.memory_space<vmem>>, vector<1x32x1xf32>
    %22 = vector.shape_cast %21 : vector<1x32x1xf32> to vector<32x1xf32>
    %23 = vector.broadcast %22 : vector<32x1xf32> to vector<32x32xf32>
    %24 = arith.addf %20, %23 : vector<32x32xf32>
    %25 = arith.maximumf %14, %24 : vector<32x32xf32>
    %c2 = arith.constant 2 : index
    %c0_16 = arith.constant 0 : index
    %c0_17 = arith.constant 0 : index
    %26 = vector.load %arg2[%c2, %c0_16, %c0_17] : memref<7x32x32xbf16, #tpu.memory_space<vmem>>, vector<1x32x32xbf16>
    %27 = vector.shape_cast %26 : vector<1x32x32xbf16> to vector<32x32xbf16>
    %28 = arith.extf %27 : vector<32x32xbf16> to vector<32x32xf32>
    %29 = arith.mulf %1, %28 : vector<32x32xf32>
    %30 = arith.truncf %29 : vector<32x32xf32> to vector<32x32xbf16>
    %cst_18 = arith.constant dense<0.000000e+00> : vector<32x32xf32>
    %31 = tpu.matmul %30, %2, %cst_18 {dimension_numbers = #tpu.dot_dimension_numbers<[1], [0], [0], [1], [0, 0, 1, 1], [], []>} : vector<32x32xbf16>, vector<32x32xbf16>, vector<32x32xf32> -> vector<32x32xf32>
    %c2_19 = arith.constant 2 : index
    %c0_20 = arith.constant 0 : index
    %c0_21 = arith.constant 0 : index
    %32 = vector.load %arg4[%c2_19, %c0_20, %c0_21] : memref<7x32x1xf32, #tpu.memory_space<vmem>>, vector<1x32x1xf32>
    %33 = vector.shape_cast %32 : vector<1x32x1xf32> to vector<32x1xf32>
    %34 = vector.broadcast %33 : vector<32x1xf32> to vector<32x32xf32>
    %35 = arith.addf %31, %34 : vector<32x32xf32>
    %36 = arith.maximumf %25, %35 : vector<32x32xf32>
    %c3 = arith.constant 3 : index
    %c0_22 = arith.constant 0 : index
    %c0_23 = arith.constant 0 : index
    %37 = vector.load %arg2[%c3, %c0_22, %c0_23] : memref<7x32x32xbf16, #tpu.memory_space<vmem>>, vector<1x32x32xbf16>
    %38 = vector.shape_cast %37 : vector<1x32x32xbf16> to vector<32x32xbf16>
    %39 = arith.extf %38 : vector<32x32xbf16> to vector<32x32xf32>
    %40 = arith.mulf %1, %39 : vector<32x32xf32>
    %41 = arith.truncf %40 : vector<32x32xf32> to vector<32x32xbf16>
    %cst_24 = arith.constant dense<0.000000e+00> : vector<32x32xf32>
    %42 = tpu.matmul %41, %2, %cst_24 {dimension_numbers = #tpu.dot_dimension_numbers<[1], [0], [0], [1], [0, 0, 1, 1], [], []>} : vector<32x32xbf16>, vector<32x32xbf16>, vector<32x32xf32> -> vector<32x32xf32>
    %c3_25 = arith.constant 3 : index
    %c0_26 = arith.constant 0 : index
    %c0_27 = arith.constant 0 : index
    %43 = vector.load %arg4[%c3_25, %c0_26, %c0_27] : memref<7x32x1xf32, #tpu.memory_space<vmem>>, vector<1x32x1xf32>
    %44 = vector.shape_cast %43 : vector<1x32x1xf32> to vector<32x1xf32>
    %45 = vector.broadcast %44 : vector<32x1xf32> to vector<32x32xf32>
    %46 = arith.addf %42, %45 : vector<32x32xf32>
    %47 = arith.maximumf %36, %46 : vector<32x32xf32>
    %c4 = arith.constant 4 : index
    %c0_28 = arith.constant 0 : index
    %c0_29 = arith.constant 0 : index
    %48 = vector.load %arg2[%c4, %c0_28, %c0_29] : memref<7x32x32xbf16, #tpu.memory_space<vmem>>, vector<1x32x32xbf16>
    %49 = vector.shape_cast %48 : vector<1x32x32xbf16> to vector<32x32xbf16>
    %50 = arith.extf %49 : vector<32x32xbf16> to vector<32x32xf32>
    %51 = arith.mulf %1, %50 : vector<32x32xf32>
    %52 = arith.truncf %51 : vector<32x32xf32> to vector<32x32xbf16>
    %cst_30 = arith.constant dense<0.000000e+00> : vector<32x32xf32>
    %53 = tpu.matmul %52, %2, %cst_30 {dimension_numbers = #tpu.dot_dimension_numbers<[1], [0], [0], [1], [0, 0, 1, 1], [], []>} : vector<32x32xbf16>, vector<32x32xbf16>, vector<32x32xf32> -> vector<32x32xf32>
    %c4_31 = arith.constant 4 : index
    %c0_32 = arith.constant 0 : index
    %c0_33 = arith.constant 0 : index
    %54 = vector.load %arg4[%c4_31, %c0_32, %c0_33] : memref<7x32x1xf32, #tpu.memory_space<vmem>>, vector<1x32x1xf32>
    %55 = vector.shape_cast %54 : vector<1x32x1xf32> to vector<32x1xf32>
    %56 = vector.broadcast %55 : vector<32x1xf32> to vector<32x32xf32>
    %57 = arith.addf %53, %56 : vector<32x32xf32>
    %58 = arith.maximumf %47, %57 : vector<32x32xf32>
    %c5 = arith.constant 5 : index
    %c0_34 = arith.constant 0 : index
    %c0_35 = arith.constant 0 : index
    %59 = vector.load %arg2[%c5, %c0_34, %c0_35] : memref<7x32x32xbf16, #tpu.memory_space<vmem>>, vector<1x32x32xbf16>
    %60 = vector.shape_cast %59 : vector<1x32x32xbf16> to vector<32x32xbf16>
    %61 = arith.extf %60 : vector<32x32xbf16> to vector<32x32xf32>
    %62 = arith.mulf %1, %61 : vector<32x32xf32>
    %63 = arith.truncf %62 : vector<32x32xf32> to vector<32x32xbf16>
    %cst_36 = arith.constant dense<0.000000e+00> : vector<32x32xf32>
    %64 = tpu.matmul %63, %2, %cst_36 {dimension_numbers = #tpu.dot_dimension_numbers<[1], [0], [0], [1], [0, 0, 1, 1], [], []>} : vector<32x32xbf16>, vector<32x32xbf16>, vector<32x32xf32> -> vector<32x32xf32>
    %c5_37 = arith.constant 5 : index
    %c0_38 = arith.constant 0 : index
    %c0_39 = arith.constant 0 : index
    %65 = vector.load %arg4[%c5_37, %c0_38, %c0_39] : memref<7x32x1xf32, #tpu.memory_space<vmem>>, vector<1x32x1xf32>
    %66 = vector.shape_cast %65 : vector<1x32x1xf32> to vector<32x1xf32>
    %67 = vector.broadcast %66 : vector<32x1xf32> to vector<32x32xf32>
    %68 = arith.addf %64, %67 : vector<32x32xf32>
    %69 = arith.maximumf %58, %68 : vector<32x32xf32>
    %c6 = arith.constant 6 : index
    %c0_40 = arith.constant 0 : index
    %c0_41 = arith.constant 0 : index
    %70 = vector.load %arg2[%c6, %c0_40, %c0_41] : memref<7x32x32xbf16, #tpu.memory_space<vmem>>, vector<1x32x32xbf16>
    %71 = vector.shape_cast %70 : vector<1x32x32xbf16> to vector<32x32xbf16>
    %72 = arith.extf %71 : vector<32x32xbf16> to vector<32x32xf32>
    %73 = arith.mulf %1, %72 : vector<32x32xf32>
    %74 = arith.truncf %73 : vector<32x32xf32> to vector<32x32xbf16>
    %cst_42 = arith.constant dense<0.000000e+00> : vector<32x32xf32>
    %75 = tpu.matmul %74, %2, %cst_42 {dimension_numbers = #tpu.dot_dimension_numbers<[1], [0], [0], [1], [0, 0, 1, 1], [], []>} : vector<32x32xbf16>, vector<32x32xbf16>, vector<32x32xf32> -> vector<32x32xf32>
    %c6_43 = arith.constant 6 : index
    %c0_44 = arith.constant 0 : index
    %c0_45 = arith.constant 0 : index
    %76 = vector.load %arg4[%c6_43, %c0_44, %c0_45] : memref<7x32x1xf32, #tpu.memory_space<vmem>>, vector<1x32x1xf32>
    %77 = vector.shape_cast %76 : vector<1x32x1xf32> to vector<32x1xf32>
    %78 = vector.broadcast %77 : vector<32x1xf32> to vector<32x32xf32>
    %79 = arith.addf %75, %78 : vector<32x32xf32>
    %80 = arith.maximumf %69, %79 : vector<32x32xf32>
    %cst_46 = arith.constant 0.000000e+00 : f32
    %81 = vector.broadcast %cst_46 : f32 to vector<32x32xf32>
    %cst_47 = arith.constant 0.000000e+00 : f32
    %82 = vector.broadcast %cst_47 : f32 to vector<32x32xf32>
    %83 = arith.subf %13, %80 : vector<32x32xf32>
    %84 = math.exp %83 : vector<32x32xf32>
    %85 = arith.addf %81, %84 : vector<32x32xf32>
    %c0_48 = arith.constant 0 : index
    %c0_49 = arith.constant 0 : index
    %c0_50 = arith.constant 0 : index
    %86 = vector.load %arg3[%c0_48, %c0_49, %c0_50] : memref<7x32x32xbf16, #tpu.memory_space<vmem>>, vector<1x32x32xbf16>
    %87 = vector.shape_cast %86 : vector<1x32x32xbf16> to vector<32x32xbf16>
    %88 = arith.extf %87 : vector<32x32xbf16> to vector<32x32xf32>
    %89 = arith.mulf %84, %88 : vector<32x32xf32>
    %90 = arith.addf %82, %89 : vector<32x32xf32>
    %91 = arith.subf %24, %80 : vector<32x32xf32>
    %92 = math.exp %91 : vector<32x32xf32>
    %93 = arith.addf %85, %92 : vector<32x32xf32>
    %c1_51 = arith.constant 1 : index
    %c0_52 = arith.constant 0 : index
    %c0_53 = arith.constant 0 : index
    %94 = vector.load %arg3[%c1_51, %c0_52, %c0_53] : memref<7x32x32xbf16, #tpu.memory_space<vmem>>, vector<1x32x32xbf16>
    %95 = vector.shape_cast %94 : vector<1x32x32xbf16> to vector<32x32xbf16>
    %96 = arith.extf %95 : vector<32x32xbf16> to vector<32x32xf32>
    %97 = arith.mulf %92, %96 : vector<32x32xf32>
    %98 = arith.addf %90, %97 : vector<32x32xf32>
    %99 = arith.subf %35, %80 : vector<32x32xf32>
    %100 = math.exp %99 : vector<32x32xf32>
    %101 = arith.addf %93, %100 : vector<32x32xf32>
    %c2_54 = arith.constant 2 : index
    %c0_55 = arith.constant 0 : index
    %c0_56 = arith.constant 0 : index
    %102 = vector.load %arg3[%c2_54, %c0_55, %c0_56] : memref<7x32x32xbf16, #tpu.memory_space<vmem>>, vector<1x32x32xbf16>
    %103 = vector.shape_cast %102 : vector<1x32x32xbf16> to vector<32x32xbf16>
    %104 = arith.extf %103 : vector<32x32xbf16> to vector<32x32xf32>
    %105 = arith.mulf %100, %104 : vector<32x32xf32>
    %106 = arith.addf %98, %105 : vector<32x32xf32>
    %107 = arith.subf %46, %80 : vector<32x32xf32>
    %108 = math.exp %107 : vector<32x32xf32>
    %109 = arith.addf %101, %108 : vector<32x32xf32>
    %c3_57 = arith.constant 3 : index
    %c0_58 = arith.constant 0 : index
    %c0_59 = arith.constant 0 : index
    %110 = vector.load %arg3[%c3_57, %c0_58, %c0_59] : memref<7x32x32xbf16, #tpu.memory_space<vmem>>, vector<1x32x32xbf16>
    %111 = vector.shape_cast %110 : vector<1x32x32xbf16> to vector<32x32xbf16>
    %112 = arith.extf %111 : vector<32x32xbf16> to vector<32x32xf32>
    %113 = arith.mulf %108, %112 : vector<32x32xf32>
    %114 = arith.addf %106, %113 : vector<32x32xf32>
    %115 = arith.subf %57, %80 : vector<32x32xf32>
    %116 = math.exp %115 : vector<32x32xf32>
    %117 = arith.addf %109, %116 : vector<32x32xf32>
    %c4_60 = arith.constant 4 : index
    %c0_61 = arith.constant 0 : index
    %c0_62 = arith.constant 0 : index
    %118 = vector.load %arg3[%c4_60, %c0_61, %c0_62] : memref<7x32x32xbf16, #tpu.memory_space<vmem>>, vector<1x32x32xbf16>
    %119 = vector.shape_cast %118 : vector<1x32x32xbf16> to vector<32x32xbf16>
    %120 = arith.extf %119 : vector<32x32xbf16> to vector<32x32xf32>
    %121 = arith.mulf %116, %120 : vector<32x32xf32>
    %122 = arith.addf %114, %121 : vector<32x32xf32>
    %123 = arith.subf %68, %80 : vector<32x32xf32>
    %124 = math.exp %123 : vector<32x32xf32>
    %125 = arith.addf %117, %124 : vector<32x32xf32>
    %c5_63 = arith.constant 5 : index
    %c0_64 = arith.constant 0 : index
    %c0_65 = arith.constant 0 : index
    %126 = vector.load %arg3[%c5_63, %c0_64, %c0_65] : memref<7x32x32xbf16, #tpu.memory_space<vmem>>, vector<1x32x32xbf16>
    %127 = vector.shape_cast %126 : vector<1x32x32xbf16> to vector<32x32xbf16>
    %128 = arith.extf %127 : vector<32x32xbf16> to vector<32x32xf32>
    %129 = arith.mulf %124, %128 : vector<32x32xf32>
    %130 = arith.addf %122, %129 : vector<32x32xf32>
    %131 = arith.subf %79, %80 : vector<32x32xf32>
    %132 = math.exp %131 : vector<32x32xf32>
    %133 = arith.addf %125, %132 : vector<32x32xf32>
    %c6_66 = arith.constant 6 : index
    %c0_67 = arith.constant 0 : index
    %c0_68 = arith.constant 0 : index
    %134 = vector.load %arg3[%c6_66, %c0_67, %c0_68] : memref<7x32x32xbf16, #tpu.memory_space<vmem>>, vector<1x32x32xbf16>
    %135 = vector.shape_cast %134 : vector<1x32x32xbf16> to vector<32x32xbf16>
    %136 = arith.extf %135 : vector<32x32xbf16> to vector<32x32xf32>
    %137 = arith.mulf %132, %136 : vector<32x32xf32>
    %138 = arith.addf %130, %137 : vector<32x32xf32>
    %139 = tpu.reciprocal %133 {approx = true} : vector<32x32xf32> -> vector<32x32xf32>
    %140 = arith.mulf %138, %139 : vector<32x32xf32>
    %141 = arith.truncf %140 : vector<32x32xf32> to vector<32x32xbf16>
    %c0_69 = arith.constant 0 : index
    %c0_70 = arith.constant 0 : index
    %142 = vector.load %arg6[%c0_69, %c0_70] : memref<32x32xbf16, #tpu.memory_space<vmem>>, vector<32x32xbf16>
    tpu.vector_store %arg6[%c0_69, %c0_70], %141 {strides = array<i32>} : memref<32x32xbf16, #tpu.memory_space<vmem>>, vector<32x32xbf16>,
    return
  }
  func.func @transform_0(%arg0: i32) -> (i32, i32) {
    %c0_i32 = arith.constant 0 : i32
    %c0_i32_0 = arith.constant 0 : i32
    return %arg0, %c0_i32 : i32, i32
  }
  func.func @transform_1(%arg0: i32) -> (i32, i32, i32) {
    %c0_i32 = arith.constant 0 : i32
    %c0_i32_0 = arith.constant 0 : i32
    %c0_i32_1 = arith.constant 0 : i32
    return %c0_i32, %arg0, %c0_i32_0 : i32, i32, i32
  }
  func.func @transform_2(%arg0: i32) -> (i32, i32, i32) {
    %c0_i32 = arith.constant 0 : i32
    %c0_i32_0 = arith.constant 0 : i32
    %c0_i32_1 = arith.constant 0 : i32
    return %c0_i32, %arg0, %c0_i32_0 : i32, i32, i32
  }
  func.func @transform_3(%arg0: i32) -> (i32, i32, i32) {
    %c0_i32 = arith.constant 0 : i32
    %c0_i32_0 = arith.constant 0 : i32
    %c0_i32_1 = arith.constant 0 : i32
    return %c0_i32, %arg0, %c0_i32_0 : i32, i32, i32
  }
  func.func @transform_4(%arg0: i32) -> (i32, i32) {
    %c0_i32 = arith.constant 0 : i32
    %c0_i32_0 = arith.constant 0 : i32
    %c0_i32_1 = arith.constant 0 : i32
    return %c0_i32, %c0_i32_0 : i32, i32
  }
  func.func @transform_5(%arg0: i32) -> (i32, i32) {
    %c0_i32 = arith.constant 0 : i32
    %c0_i32_0 = arith.constant 0 : i32
    return %arg0, %c0_i32 : i32, i32
  }
}

module attributes {stable_mosaic.version = 11 : i64} {
  func.func @block_kernel(%arg0: i32, %arg1: memref<32x32xbf16, #tpu.memory_space<vmem>>, %arg2: memref<32x32xf32, #tpu.memory_space<vmem>>, %arg3: memref<32x32xbf16, #tpu.memory_space<vmem>>, %arg4: memref<1x32xf32, #tpu.memory_space<vmem>>, %arg5: memref<1x32xf32, #tpu.memory_space<vmem>>, %arg6: memref<1x32xf32, #tpu.memory_space<vmem>>, %arg7: memref<32x128xbf16, #tpu.memory_space<vmem>>, %arg8: memref<1x128xf32, #tpu.memory_space<vmem>>, %arg9: memref<128x32xbf16, #tpu.memory_space<vmem>>, %arg10: memref<1x32xf32, #tpu.memory_space<vmem>>, %arg11: memref<32x32xf32, #tpu.memory_space<vmem>>) attributes {dimension_semantics = [#tpu.dimension_semantics<parallel>], iteration_bounds = array<i64: 1>, scalar_prefetch = 0 : i64, scratch_operands = 0 : i64, tpu.core_type = #tpu.core_type<tc>, window_params = [{transform_indices = @transform_0, window_bounds = array<i64: 32, 32>}, {transform_indices = @transform_1, window_bounds = array<i64: 32, 32>}, {pipeline_mode = #tpu.pipeline_mode<synchronous>, transform_indices = @transform_2, window_bounds = array<i64: 32, 32>}, {pipeline_mode = #tpu.pipeline_mode<synchronous>, transform_indices = @transform_3, window_bounds = array<i64: 1, 32>}, {pipeline_mode = #tpu.pipeline_mode<synchronous>, transform_indices = @transform_4, window_bounds = array<i64: 1, 32>}, {pipeline_mode = #tpu.pipeline_mode<synchronous>, transform_indices = @transform_5, window_bounds = array<i64: 1, 32>}, {pipeline_mode = #tpu.pipeline_mode<synchronous>, transform_indices = @transform_6, window_bounds = array<i64: 32, 128>}, {pipeline_mode = #tpu.pipeline_mode<synchronous>, transform_indices = @transform_7, window_bounds = array<i64: 1, 128>}, {pipeline_mode = #tpu.pipeline_mode<synchronous>, transform_indices = @transform_8, window_bounds = array<i64: 128, 32>}, {pipeline_mode = #tpu.pipeline_mode<synchronous>, transform_indices = @transform_9, window_bounds = array<i64: 1, 32>}, {transform_indices = @transform_10, window_bounds = array<i64: 32, 32>}]} {
    %c0 = arith.constant 0 : index
    %c0_0 = arith.constant 0 : index
    %0 = vector.load %arg1[%c0, %c0_0] : memref<32x32xbf16, #tpu.memory_space<vmem>>, vector<32x32xbf16>
    %c0_1 = arith.constant 0 : index
    %c0_2 = arith.constant 0 : index
    %1 = vector.load %arg3[%c0_1, %c0_2] : memref<32x32xbf16, #tpu.memory_space<vmem>>, vector<32x32xbf16>
    %cst = arith.constant dense<0.000000e+00> : vector<32x32xf32>
    %2 = tpu.matmul %0, %1, %cst {dimension_numbers = #tpu.dot_dimension_numbers<[1], [0], [0], [1], [0, 0, 1, 1], [], []>} : vector<32x32xbf16>, vector<32x32xbf16>, vector<32x32xf32> -> vector<32x32xf32>
    %c0_3 = arith.constant 0 : index
    %c0_4 = arith.constant 0 : index
    %3 = vector.load %arg4[%c0_3, %c0_4] : memref<1x32xf32, #tpu.memory_space<vmem>>, vector<1x32xf32>
    %4 = vector.broadcast %3 : vector<1x32xf32> to vector<32x32xf32>
    %5 = arith.addf %2, %4 : vector<32x32xf32>
    %c0_5 = arith.constant 0 : index
    %c0_6 = arith.constant 0 : index
    %6 = vector.load %arg2[%c0_5, %c0_6] : memref<32x32xf32, #tpu.memory_space<vmem>>, vector<32x32xf32>
    %7 = arith.addf %5, %6 : vector<32x32xf32>
    %c0_7 = arith.constant 0 : index
    %c0_8 = arith.constant 0 : index
    %8 = vector.load %arg5[%c0_7, %c0_8] : memref<1x32xf32, #tpu.memory_space<vmem>>, vector<1x32xf32>
    %c0_9 = arith.constant 0 : index
    %c0_10 = arith.constant 0 : index
    %9 = vector.load %arg6[%c0_9, %c0_10] : memref<1x32xf32, #tpu.memory_space<vmem>>, vector<1x32xf32>
    %cst_11 = arith.constant dense<0.000000e+00> : vector<32xf32>
    %10 = vector.multi_reduction <add>, %7, %cst_11 [1] : vector<32x32xf32> to vector<32xf32>
    %11 = vector.shape_cast %10 : vector<32xf32> to vector<32x1xf32>
    %cst_12 = arith.constant 3.200000e+01 : f32
    %12 = vector.broadcast %cst_12 : f32 to vector<32x1xf32>
    %13 = arith.divf %11, %12 : vector<32x1xf32>
    %14 = vector.broadcast %13 : vector<32x1xf32> to vector<32x32xf32>
    %15 = arith.subf %7, %14 : vector<32x32xf32>
    %16 = arith.mulf %15, %15 : vector<32x32xf32>
    %cst_13 = arith.constant dense<0.000000e+00> : vector<32xf32>
    %17 = vector.multi_reduction <add>, %16, %cst_13 [1] : vector<32x32xf32> to vector<32xf32>
    %18 = vector.shape_cast %17 : vector<32xf32> to vector<32x1xf32>
    %cst_14 = arith.constant 3.200000e+01 : f32
    %19 = vector.broadcast %cst_14 : f32 to vector<32x1xf32>
    %20 = arith.divf %18, %19 : vector<32x1xf32>
    %cst_15 = arith.constant 9.99999997E-7 : f32
    %21 = vector.broadcast %cst_15 : f32 to vector<32x1xf32>
    %22 = arith.addf %20, %21 : vector<32x1xf32>
    %23 = math.rsqrt %22 : vector<32x1xf32>
    %24 = vector.broadcast %23 : vector<32x1xf32> to vector<32x32xf32>
    %25 = arith.mulf %15, %24 : vector<32x32xf32>
    %26 = vector.broadcast %8 : vector<1x32xf32> to vector<32x32xf32>
    %27 = arith.mulf %25, %26 : vector<32x32xf32>
    %28 = vector.broadcast %9 : vector<1x32xf32> to vector<32x32xf32>
    %29 = arith.addf %27, %28 : vector<32x32xf32>
    %30 = arith.truncf %29 : vector<32x32xf32> to vector<32x32xbf16>
    %c0_16 = arith.constant 0 : index
    %c0_17 = arith.constant 0 : index
    %31 = vector.load %arg7[%c0_16, %c0_17] : memref<32x128xbf16, #tpu.memory_space<vmem>>, vector<32x128xbf16>
    %cst_18 = arith.constant dense<0.000000e+00> : vector<32x128xf32>
    %32 = tpu.matmul %30, %31, %cst_18 {dimension_numbers = #tpu.dot_dimension_numbers<[1], [0], [0], [1], [0, 0, 1, 1], [], []>} : vector<32x32xbf16>, vector<32x128xbf16>, vector<32x128xf32> -> vector<32x128xf32>
    %c0_19 = arith.constant 0 : index
    %c0_20 = arith.constant 0 : index
    %33 = vector.load %arg8[%c0_19, %c0_20] : memref<1x128xf32, #tpu.memory_space<vmem>>, vector<1x128xf32>
    %34 = vector.broadcast %33 : vector<1x128xf32> to vector<32x128xf32>
    %35 = arith.addf %32, %34 : vector<32x128xf32>
    %cst_21 = arith.constant 5.000000e-01 : f32
    %36 = vector.broadcast %cst_21 : f32 to vector<32x128xf32>
    %37 = arith.mulf %36, %35 : vector<32x128xf32>
    %cst_22 = arith.constant 0.707106769 : f32
    %38 = vector.broadcast %cst_22 : f32 to vector<32x128xf32>
    %39 = arith.mulf %35, %38 : vector<32x128xf32>
    %40 = math.erf %39 : vector<32x128xf32>
    %cst_23 = arith.constant 1.000000e+00 : f32
    %41 = vector.broadcast %cst_23 : f32 to vector<32x128xf32>
    %42 = arith.addf %41, %40 : vector<32x128xf32>
    %43 = arith.mulf %37, %42 : vector<32x128xf32>
    %44 = arith.truncf %43 : vector<32x128xf32> to vector<32x128xbf16>
    %c0_24 = arith.constant 0 : index
    %c0_25 = arith.constant 0 : index
    %45 = vector.load %arg9[%c0_24, %c0_25] : memref<128x32xbf16, #tpu.memory_space<vmem>>, vector<128x32xbf16>
    %cst_26 = arith.constant dense<0.000000e+00> : vector<32x32xf32>
    %46 = tpu.matmul %44, %45, %cst_26 {dimension_numbers = #tpu.dot_dimension_numbers<[1], [0], [0], [1], [0, 0, 1, 1], [], []>} : vector<32x128xbf16>, vector<128x32xbf16>, vector<32x32xf32> -> vector<32x32xf32>
    %c0_27 = arith.constant 0 : index
    %c0_28 = arith.constant 0 : index
    %47 = vector.load %arg10[%c0_27, %c0_28] : memref<1x32xf32, #tpu.memory_space<vmem>>, vector<1x32xf32>
    %48 = vector.broadcast %47 : vector<1x32xf32> to vector<32x32xf32>
    %49 = arith.addf %46, %48 : vector<32x32xf32>
    %50 = arith.addf %49, %7 : vector<32x32xf32>
    %c0_29 = arith.constant 0 : index
    %c0_30 = arith.constant 0 : index
    %51 = vector.load %arg11[%c0_29, %c0_30] : memref<32x32xf32, #tpu.memory_space<vmem>>, vector<32x32xf32>
    tpu.vector_store %arg11[%c0_29, %c0_30], %50 {strides = array<i32>} : memref<32x32xf32, #tpu.memory_space<vmem>>, vector<32x32xf32>,
    return
  }
  func.func @transform_0(%arg0: i32) -> (i32, i32) {
    %c0_i32 = arith.constant 0 : i32
    %c0_i32_0 = arith.constant 0 : i32
    return %arg0, %c0_i32 : i32, i32
  }
  func.func @transform_1(%arg0: i32) -> (i32, i32) {
    %c0_i32 = arith.constant 0 : i32
    %c0_i32_0 = arith.constant 0 : i32
    return %arg0, %c0_i32 : i32, i32
  }
  func.func @transform_2(%arg0: i32) -> (i32, i32) {
    %c0_i32 = arith.constant 0 : i32
    %c0_i32_0 = arith.constant 0 : i32
    %c0_i32_1 = arith.constant 0 : i32
    return %c0_i32, %c0_i32_0 : i32, i32
  }
  func.func @transform_3(%arg0: i32) -> (i32, i32) {
    %c0_i32 = arith.constant 0 : i32
    %c0_i32_0 = arith.constant 0 : i32
    %c0_i32_1 = arith.constant 0 : i32
    return %c0_i32, %c0_i32_0 : i32, i32
  }
  func.func @transform_4(%arg0: i32) -> (i32, i32) {
    %c0_i32 = arith.constant 0 : i32
    %c0_i32_0 = arith.constant 0 : i32
    %c0_i32_1 = arith.constant 0 : i32
    return %c0_i32, %c0_i32_0 : i32, i32
  }
  func.func @transform_5(%arg0: i32) -> (i32, i32) {
    %c0_i32 = arith.constant 0 : i32
    %c0_i32_0 = arith.constant 0 : i32
    %c0_i32_1 = arith.constant 0 : i32
    return %c0_i32, %c0_i32_0 : i32, i32
  }
  func.func @transform_6(%arg0: i32) -> (i32, i32) {
    %c0_i32 = arith.constant 0 : i32
    %c0_i32_0 = arith.constant 0 : i32
    %c0_i32_1 = arith.constant 0 : i32
    return %c0_i32, %c0_i32_0 : i32, i32
  }
  func.func @transform_7(%arg0: i32) -> (i32, i32) {
    %c0_i32 = arith.constant 0 : i32
    %c0_i32_0 = arith.constant 0 : i32
    %c0_i32_1 = arith.constant 0 : i32
    return %c0_i32, %c0_i32_0 : i32, i32
  }
  func.func @transform_8(%arg0: i32) -> (i32, i32) {
    %c0_i32 = arith.constant 0 : i32
    %c0_i32_0 = arith.constant 0 : i32
    %c0_i32_1 = arith.constant 0 : i32
    return %c0_i32, %c0_i32_0 : i32, i32
  }
  func.func @transform_9(%arg0: i32) -> (i32, i32) {
    %c0_i32 = arith.constant 0 : i32
    %c0_i32_0 = arith.constant 0 : i32
    %c0_i32_1 = arith.constant 0 : i32
    return %c0_i32, %c0_i32_0 : i32, i32
  }
  func.func @transform_10(%arg0: i32) -> (i32, i32) {
    %c0_i32 = arith.constant 0 : i32
    %c0_i32_0 = arith.constant 0 : i32
    return %arg0, %c0_i32 : i32, i32
  }
}

</mosaic_0001>

<llo_original>
// kernel: transformer_block_pallas.3
$region0: #{transformer_block_pallas.3}
  #allocation0 [shape = 'u32[]', space=smem, size = 0x4, offset = 0x4, fixed_abs, tag = 'smem constant byte address 0x4 - core index']
  #allocation1 [shape = 'u32[144,128]{1,0:T(1,128)}', space=vmem, size = 0x12000, scoped, tag = 'internal scratch']
  %s0 = inlined_call_operand.vmem [shape: f32[32,32], index: 0, kind: input, shape index: {}]
  %s1 = inlined_call_operand.vmem [shape: f32[1,32], index: 1, kind: input, shape index: {}]
  %s2 = inlined_call_operand.vmem [shape: f32[1,32], index: 2, kind: input, shape index: {}]
  %s3 = inlined_call_operand.vmem [shape: bf16[32,96], index: 3, kind: input, shape index: {}]
  %s4 = inlined_call_operand.vmem [shape: f32[1,96], index: 4, kind: input, shape index: {}]
  %s5 = inlined_call_operand.vmem [shape: bf16[32,96], index: 5, kind: output, shape index: {}]
  %s6 = sld [smem:[#allocation0]]
  $region30: #{transformer_block_pallas.3} parent=0
    _
  %s8 = ssub.s32 1, %s6
  %s9 = scalar_select 0, %s8, %s6
  // Predicated region
  $region2: #{transformer_block_pallas.3} parent=0 // pred_check
    _
  $region3: #{transformer_block_pallas.3} parent=0 // pred_check_branch
    %11 = sbr.rel (0) target = $region5
  $region4: #{transformer_block_pallas.3} parent=0 // pred_region
    _
  $region5: #{transformer_block_pallas.3} parent=0 // pred_fallthru
    _
  // Predicated region
  $region6: #{transformer_block_pallas.3} parent=0 // pred_check
    _
  $region7: #{transformer_block_pallas.3} parent=0 // pred_check_branch
    %13 = sbr.rel (0) target = $region9
  $region8: #{transformer_block_pallas.3} parent=0 // pred_region
    _
  $region9: #{transformer_block_pallas.3} parent=0 // pred_fallthru
    _
  // Predicated region
  $region10: #{transformer_block_pallas.3} parent=0 // pred_check
    _
  $region11: #{transformer_block_pallas.3} parent=0 // pred_check_branch
    %15 = sbr.rel (0) target = $region13
  $region12: #{transformer_block_pallas.3} parent=0 // pred_region
    _
  $region13: #{transformer_block_pallas.3} parent=0 // pred_fallthru
    _
  // Predicated region
  $region14: #{transformer_block_pallas.3} parent=0 // pred_check
    _
  $region15: #{transformer_block_pallas.3} parent=0 // pred_check_branch
    %17 = sbr.rel (0) target = $region17
  $region16: #{transformer_block_pallas.3} parent=0 // pred_region
    _
  $region17: #{transformer_block_pallas.3} parent=0 // pred_fallthru
    _
  // Predicated region
  $region18: #{transformer_block_pallas.3} parent=0 // pred_check
    _
  $region19: #{transformer_block_pallas.3} parent=0 // pred_check_branch
    %19 = sbr.rel (0) target = $region21
  $region20: #{transformer_block_pallas.3} parent=0 // pred_region
    _
  $region21: #{transformer_block_pallas.3} parent=0 // pred_fallthru
    _
  %v21 = vld [vmem:[%s0] sm:$0xff]
  %v22 = vld [vmem:[%s0 + $0x8] sm:$0xff]
  %v23 = vld [vmem:[%s0 + $0x10] sm:$0xff]
  %v24 = vld [vmem:[%s0 + $0x18] sm:$0xff]
  %v25 = vld [vmem:[%s1] sm:$0x1]
  %v26 = vld [vmem:[%s2] sm:$0x1]
  %vm27 = vcmask 261120
  %v28 = vsel %vm27, %v21, 0.0
  %29 = vadd.xlane.f32.xlu0 %v28
  %v30 = vpop.xlane.xlu0 %29
  %v31 = vsel %vm27, %v22, 0.0
  %32 = vadd.xlane.f32.xlu0 %v31
  %v33 = vpop.xlane.xlu0 %32
  %v34 = vsel %vm27, %v23, 0.0
  %35 = vadd.xlane.f32.xlu0 %v34
  %v36 = vpop.xlane.xlu0 %35
  %v37 = vsel %vm27, %v24, 0.0
  %38 = vadd.xlane.f32.xlu0 %v37
  %v39 = vpop.xlane.xlu0 %38
  %v40 = vrcp.pop 32.0
  %v41 = vmul.f32 %v30, %v40
  %v42 = vmul.f32 %v33, %v40
  %v43 = vmul.f32 %v36, %v40
  %v44 = vmul.f32 %v39, %v40
  %v45 = vsub.f32 %v21, %v41
  %v46 = vsub.f32 %v22, %v42
  %v47 = vsub.f32 %v23, %v43
  %v48 = vsub.f32 %v24, %v44
  %v49 = vmul.f32 %v45, %v45
  %v50 = vmul.f32 %v46, %v46
  %v51 = vmul.f32 %v47, %v47
  %v52 = vmul.f32 %v48, %v48
  %v53 = vsel %vm27, %v49, 0.0
  %54 = vadd.xlane.f32.xlu0 %v53
  %v55 = vpop.xlane.xlu0 %54
  %v56 = vsel %vm27, %v50, 0.0
  %57 = vadd.xlane.f32.xlu0 %v56
  %v58 = vpop.xlane.xlu0 %57
  %v59 = vsel %vm27, %v51, 0.0
  %60 = vadd.xlane.f32.xlu0 %v59
  %v61 = vpop.xlane.xlu0 %60
  %v62 = vsel %vm27, %v52, 0.0
  %63 = vadd.xlane.f32.xlu0 %v62
  %v64 = vpop.xlane.xlu0 %63
  %v65 = vmul.f32 %v55, %v40
  %v66 = vmul.f32 %v58, %v40
  %v67 = vmul.f32 %v61, %v40
  %v68 = vmul.f32 %v64, %v40
  %v69 = vadd.f32 %v65, 1e-06
  %v70 = vadd.f32 %v66, 1e-06
  %v71 = vadd.f32 %v67, 1e-06
  %v72 = vadd.f32 %v68, 1e-06
  %v73 = vrsqrt.pop %v69
  %v74 = vrsqrt.pop %v70
  %v75 = vrsqrt.pop %v71
  %v76 = vrsqrt.pop %v72
  %v77 = vmul.f32 %v45, %v73
  %v78 = vmul.f32 %v46, %v74
  %v79 = vmul.f32 %v47, %v75
  %v80 = vmul.f32 %v48, %v76
  %v82 = vlaneseq
  %v83 = vshrl.u32 %v82, 7
  %v84 = vsub.s32 0, %v83
  %v85 = vrot.slane %v25, %v84
  %v87 = vmul.f32 %v77, %v85
  %v88 = vmul.f32 %v78, %v85
  %v89 = vmul.f32 %v79, %v85
  %v90 = vmul.f32 %v80, %v85
  %v92 = vlaneseq
  %v93 = vshrl.u32 %v92, 7
  %v94 = vsub.s32 0, %v93
  %v95 = vrot.slane %v26, %v94
  %v97 = vadd.f32 %v87, %v95
  %v98 = vadd.f32 %v88, %v95
  %v99 = vadd.f32 %v89, %v95
  %v100 = vadd.f32 %v90, %v95
  %v101 = vpack.c.bf16 %v98, %v97
  %v102 = vpack.c.bf16 %v100, %v99
  %v103 = vld [vmem:[%s3] sm:$0xf]
  %v104 = vld [vmem:[%s3 + $0x4] sm:$0xf]
  %v105 = vld [vmem:[%s3 + $0x8] sm:$0xf]
  %v106 = vld [vmem:[%s3 + $0xc] sm:$0xf]
  %v107 = vld [vmem:[%s4] sm:$0x1]
  %v109 = vlaneseq
  %v110 = vshrl.u32 %v109, 7
  %v111 = vsub.s32 0, %v110
  %v112 = vrot.slane %v107, %v111
  %v118 = vunpack.c.l.b16 %v103
  %v119 = vunpack.c.l.b16 %v104
  %v120 = vunpack.c.l.b16 %v105
  %v121 = vunpack.c.l.b16 %v106
  %v122 = vpack.c.b16 %v119, %v118
  %v123 = vpack.c.b16 %v121, %v120
  %v127 = vsel %vm27, %v101, 0
  %v130 = vsel %vm27, %v102, 0
  %132 = vmatprep.subr.bf16.mxu0 0
  %133 = vmatpush1.bf16.msra.mxu0 %v122
  %134 = vmatprep.subr.bf16.mxu0 0
  %135 = vmatpush1.bf16.msra.mxu0 %v123
  %136 = vmatprep.subr.bf16.mxu0 0
  %137 = vmatpush1.bf16.msra.mxu0 0
  %138 = vmatprep.subr.bf16.mxu0 0
  %139 = vmatpush1.bf16.msra.mxu0 0
  %140 = vmatprep.subr.bf16.mxu0 0
  %141 = vmatpush1.bf16.msra.mxu0 0
  %142 = vmatprep.subr.bf16.mxu0 0
  %143 = vmatpush1.bf16.msra.mxu0 0
  %144 = vmatprep.subr.bf16.mxu0 0
  %145 = vmatpush1.bf16.msra.mxu0 0
  %146 = vmatprep.subr.bf16.mxu0 0
  %147 = vmatpush1.bf16.msra.mxu0 0
  %148 = vmatprep.subr.bf16.mxu0 0
  %149 = vmatpush1.bf16.msra.mxu0 0
  %150 = vmatprep.subr.bf16.mxu0 0
  %151 = vmatpush1.bf16.msra.mxu0 0
  %152 = vmatprep.subr.bf16.mxu0 0
  %153 = vmatpush1.bf16.msra.mxu0 0
  %154 = vmatprep.subr.bf16.mxu0 0
  %155 = vmatpush1.bf16.msra.mxu0 0
  %156 = vmatprep.subr.bf16.mxu0 0
  %157 = vmatpush1.bf16.msra.mxu0 0
  %158 = vmatprep.subr.bf16.mxu0 0
  %159 = vmatpush1.bf16.msra.mxu0 0
  %160 = vmatprep.subr.bf16.mxu0 0
  %161 = vmatpush1.bf16.msra.mxu0 0
  %162 = vmatprep.subr.bf16.mxu0 0
  %163 = vmatpush1.bf16.msra.mxu0 0
  %164 = vmatprep.mubr.bf16.mxu0 0
  %165 = vmatmul.mubr.bf16.gmra.mrb[0].mxu0 %v127
  %v166 = vpop.f32.mrb[0].mxu0
  %v167 = vadd.f32 %v112, %v166
  %v168 = vpop.f32.mrb[0].mxu0
  %v169 = vpop.f32.mrb[0].mxu0
  %v170 = vadd.f32 %v112, %v169
  %v171 = vpop.f32.mrb[0].mxu0
  %172 = vmatprep.mubr.bf16.mxu0 0
  %173 = vmatmul.mubr.bf16.gmra.mrb[0].mxu0 %v130
  %v174 = vpop.f32.mrb[0].mxu0
  %v175 = vadd.f32 %v112, %v174
  %v176 = vpop.f32.mrb[0].mxu0
  %v177 = vpop.f32.mrb[0].mxu0
  %v178 = vadd.f32 %v112, %v177
  %v179 = vpop.f32.mrb[0].mxu0
  %180 = vdwg.mxu0
  %v181 = vpack.c.bf16 %v170, %v167
  %v182 = vpack.c.bf16 %v178, %v175
  %v185 = vunpack.c.l.b16 %v181
  %v186 = vunpack.c.h.b16 %v181
  %v187 = vunpack.c.l.b16 %v182
  %v188 = vunpack.c.h.b16 %v182
  %v189 = vpack.c.b16 %v185, %v185
  %v190 = vpack.c.b16 %v186, %v186
  %v191 = vpack.c.b16 %v187, %v187
  %v192 = vpack.c.b16 %v188, %v188
  %vm197 = vcmask 781312
  %198 = vst.msk [vmem:[%s5] sm:$0xf] %vm197, %v189
  %199 = vst.msk [vmem:[%s5 + $0x4] sm:$0xf] %vm197, %v190
  %200 = vst.msk [vmem:[%s5 + $0x8] sm:$0xf] %vm197, %v191
  %201 = vst.msk [vmem:[%s5 + $0xc] sm:$0xf] %vm197, %v192
  // Predicated region
  $region22: #{transformer_block_pallas.3} parent=0 // pred_check
    _
  $region23: #{transformer_block_pallas.3} parent=0 // pred_check_branch
    %203 = sbr.rel (0) target = $region25
  $region24: #{transformer_block_pallas.3} parent=0 // pred_region
    _
  $region25: #{transformer_block_pallas.3} parent=0 // pred_fallthru
    _
  // Predicated region
  $region26: #{transformer_block_pallas.3} parent=0 // pred_check
    _
  $region27: #{transformer_block_pallas.3} parent=0 // pred_check_branch
    %205 = sbr.rel (0) target = $region29
  $region28: #{transformer_block_pallas.3} parent=0 // pred_region
    _
  $region29: #{transformer_block_pallas.3} parent=0 // pred_fallthru
    _

// kernel: transformer_block_pallas.5
$region0: #{transformer_block_pallas.5}
  #allocation0 [shape = 'u32[]', space=smem, size = 0x4, offset = 0x4, fixed_abs, tag = 'smem constant byte address 0x4 - core index']
  #allocation1 [shape = 'u32[144,128]{1,0:T(1,128)}', space=vmem, size = 0x12000, scoped, tag = 'internal scratch']
  %s0 = inlined_call_operand.vmem [shape: bf16[32,32], index: 0, kind: input, shape index: {}]
  %s1 = inlined_call_operand.vmem [shape: f32[32,32], index: 1, kind: input, shape index: {}]
  %s2 = inlined_call_operand.vmem [shape: bf16[32,32], index: 2, kind: input, shape index: {}]
  %s3 = inlined_call_operand.vmem [shape: f32[1,32], index: 3, kind: input, shape index: {}]
  %s4 = inlined_call_operand.vmem [shape: f32[1,32], index: 4, kind: input, shape index: {}]
  %s5 = inlined_call_operand.vmem [shape: f32[1,32], index: 5, kind: input, shape index: {}]
  %s6 = inlined_call_operand.vmem [shape: bf16[32,128], index: 6, kind: input, shape index: {}]
  %s7 = inlined_call_operand.vmem [shape: f32[1,128], index: 7, kind: input, shape index: {}]
  %s8 = inlined_call_operand.vmem [shape: bf16[128,32], index: 8, kind: input, shape index: {}]
  %s9 = inlined_call_operand.vmem [shape: f32[1,32], index: 9, kind: input, shape index: {}]
  %s10 = inlined_call_operand.hbm [shape: f32[32,32], index: 10, kind: output, shape index: {}]
  %s11 = sld [smem:[#allocation0]]
  $region50: #{transformer_block_pallas.5} parent=0
    _
  %s13 = ssub.s32 1, %s11
  %s14 = scalar_select 0, %s13, %s11
  $region1: #{transformer_block_pallas.5} parent=0
    #allocation2 [shape = 'u8[16384]{0}', space=vmem, size = 0x4000, scoped, tag = 'output window, operand 0, single buffered']
    #allocation3 [shape = 's32[1]{0}', space=sflag, size = 0x4, scoped, tag = 'scoped memory for transformer_block_pallas.5']
    %15 = vsyncpa [#allocation3], 0
    // Predicated region
    $region2: #{transformer_block_pallas.5} parent=1 // pred_check
      _
    $region3: #{transformer_block_pallas.5} parent=1 // pred_check_branch
      %17 = sbr.rel (0) target = $region5
    $region4: #{transformer_block_pallas.5} parent=1 // pred_region
      _
    $region5: #{transformer_block_pallas.5} parent=1 // pred_fallthru
      _
    // Predicated region
    $region6: #{transformer_block_pallas.5} parent=1 // pred_check
      _
    $region7: #{transformer_block_pallas.5} parent=1 // pred_check_branch
      %19 = sbr.rel (0) target = $region9
    $region8: #{transformer_block_pallas.5} parent=1 // pred_region
      _
    $region9: #{transformer_block_pallas.5} parent=1 // pred_fallthru
      _
    // Predicated region
    $region10: #{transformer_block_pallas.5} parent=1 // pred_check
      _
    $region11: #{transformer_block_pallas.5} parent=1 // pred_check_branch
      %21 = sbr.rel (0) target = $region13
    $region12: #{transformer_block_pallas.5} parent=1 // pred_region
      _
    $region13: #{transformer_block_pallas.5} parent=1 // pred_fallthru
      _
    // Predicated region
    $region14: #{transformer_block_pallas.5} parent=1 // pred_check
      _
    $region15: #{transformer_block_pallas.5} parent=1 // pred_check_branch
      %23 = sbr.rel (0) target = $region17
    $region16: #{transformer_block_pallas.5} parent=1 // pred_region
      _
    $region17: #{transformer_block_pallas.5} parent=1 // pred_fallthru
      _
    // Predicated region
    $region18: #{transformer_block_pallas.5} parent=1 // pred_check
      _
    $region19: #{transformer_block_pallas.5} parent=1 // pred_check_branch
      %25 = sbr.rel (0) target = $region21
    $region20: #{transformer_block_pallas.5} parent=1 // pred_region
      _
    $region21: #{transformer_block_pallas.5} parent=1 // pred_fallthru
      _
    // Predicated region
    $region22: #{transformer_block_pallas.5} parent=1 // pred_check
      _
    $region23: #{transformer_block_pallas.5} parent=1 // pred_check_branch
      %27 = sbr.rel (0) target = $region25
    $region24: #{transformer_block_pallas.5} parent=1 // pred_region
      _
    $region25: #{transformer_block_pallas.5} parent=1 // pred_fallthru
      _
    // Predicated region
    $region26: #{transformer_block_pallas.5} parent=1 // pred_check
      _
    $region27: #{transformer_block_pallas.5} parent=1 // pred_check_branch
      %29 = sbr.rel (0) target = $region29
    $region28: #{transformer_block_pallas.5} parent=1 // pred_region
      _
    $region29: #{transformer_block_pallas.5} parent=1 // pred_fallthru
      _
    // Predicated region
    $region30: #{transformer_block_pallas.5} parent=1 // pred_check
      _
    $region31: #{transformer_block_pallas.5} parent=1 // pred_check_branch
      %31 = sbr.rel (0) target = $region33
    $region32: #{transformer_block_pallas.5} parent=1 // pred_region
      _
    $region33: #{transformer_block_pallas.5} parent=1 // pred_fallthru
      _
    // Predicated region
    $region34: #{transformer_block_pallas.5} parent=1 // pred_check
      _
    $region35: #{transformer_block_pallas.5} parent=1 // pred_check_branch
      %33 = sbr.rel (0) target = $region37
    $region36: #{transformer_block_pallas.5} parent=1 // pred_region
      _
    $region37: #{transformer_block_pallas.5} parent=1 // pred_fallthru
      _
    // Predicated region
    $region38: #{transformer_block_pallas.5} parent=1 // pred_check
      _
    $region39: #{transformer_block_pallas.5} parent=1 // pred_check_branch
      %35 = sbr.rel (0) target = $region41
    $region40: #{transformer_block_pallas.5} parent=1 // pred_region
      _
    $region41: #{transformer_block_pallas.5} parent=1 // pred_fallthru
      _
    %v37 = vld [vmem:[%s0] sm:$0xf]
    %v38 = vld [vmem:[%s0 + $0x4] sm:$0xf]
    %v39 = vld [vmem:[%s0 + $0x8] sm:$0xf]
    %v40 = vld [vmem:[%s0 + $0xc] sm:$0xf]
    %v41 = vld [vmem:[%s2] sm:$0xf]
    %v42 = vld [vmem:[%s2 + $0x4] sm:$0xf]
    %v43 = vld [vmem:[%s2 + $0x8] sm:$0xf]
    %v44 = vld [vmem:[%s2 + $0xc] sm:$0xf]
    %v45 = vld [vmem:[%s3] sm:$0x1]
    %v47 = vlaneseq
    %v48 = vshrl.u32 %v47, 7
    %v49 = vsub.s32 0, %v48
    %v50 = vrot.slane %v45, %v49
    %v56 = vunpack.c.l.b16 %v37
    %v57 = vunpack.c.l.b16 %v38
    %v58 = vunpack.c.l.b16 %v39
    %v59 = vunpack.c.l.b16 %v40
    %v60 = vpack.c.b16 %v57, %v56
    %v61 = vpack.c.b16 %v59, %v58
    %v66 = vunpack.c.l.b16 %v41
    %v67 = vunpack.c.l.b16 %v42
    %v68 = vunpack.c.l.b16 %v43
    %v69 = vunpack.c.l.b16 %v44
    %v70 = vpack.c.b16 %v67, %v66
    %v71 = vpack.c.b16 %v69, %v68
    %vm74 = vcmask 261120
    %v76 = vsel %vm74, %v60, 0
    %v79 = vsel %vm74, %v61, 0
    %81 = vmatprep.subr.bf16.mxu0 0
    %82 = vmatpush1.bf16.msra.mxu0 %v70
    %83 = vmatprep.subr.bf16.mxu0 0
    %84 = vmatpush1.bf16.msra.mxu0 %v71
    %85 = vmatprep.subr.bf16.mxu0 0
    %86 = vmatpush1.bf16.msra.mxu0 0
    %87 = vmatprep.subr.bf16.mxu0 0
    %88 = vmatpush1.bf16.msra.mxu0 0
    %89 = vmatprep.subr.bf16.mxu0 0
    %90 = vmatpush1.bf16.msra.mxu0 0
    %91 = vmatprep.subr.bf16.mxu0 0
    %92 = vmatpush1.bf16.msra.mxu0 0
    %93 = vmatprep.subr.bf16.mxu0 0
    %94 = vmatpush1.bf16.msra.mxu0 0
    %95 = vmatprep.subr.bf16.mxu0 0
    %96 = vmatpush1.bf16.msra.mxu0 0
    %97 = vmatprep.subr.bf16.mxu0 0
    %98 = vmatpush1.bf16.msra.mxu0 0
    %99 = vmatprep.subr.bf16.mxu0 0
    %100 = vmatpush1.bf16.msra.mxu0 0
    %101 = vmatprep.subr.bf16.mxu0 0
    %102 = vmatpush1.bf16.msra.mxu0 0
    %103 = vmatprep.subr.bf16.mxu0 0
    %104 = vmatpush1.bf16.msra.mxu0 0
    %105 = vmatprep.subr.bf16.mxu0 0
    %106 = vmatpush1.bf16.msra.mxu0 0
    %107 = vmatprep.subr.bf16.mxu0 0
    %108 = vmatpush1.bf16.msra.mxu0 0
    %109 = vmatprep.subr.bf16.mxu0 0
    %110 = vmatpush1.bf16.msra.mxu0 0
    %111 = vmatprep.subr.bf16.mxu0 0
    %112 = vmatpush1.bf16.msra.mxu0 0
    %113 = vmatprep.mubr.bf16.mxu0 0
    %114 = vmatmul.mubr.bf16.gmra.mrb[0].mxu0 %v76
    %v115 = vpop.f32.mrb[0].mxu0
    %v116 = vadd.f32 %v50, %v115
    %v117 = vpop.f32.mrb[0].mxu0
    %v118 = vpop.f32.mrb[0].mxu0
    %v119 = vadd.f32 %v50, %v118
    %v120 = vpop.f32.mrb[0].mxu0
    %121 = vmatprep.mubr.bf16.mxu0 0
    %122 = vmatmul.mubr.bf16.gmra.mrb[0].mxu0 %v79
    %v123 = vpop.f32.mrb[0].mxu0
    %v124 = vadd.f32 %v50, %v123
    %v125 = vpop.f32.mrb[0].mxu0
    %v126 = vpop.f32.mrb[0].mxu0
    %v127 = vadd.f32 %v50, %v126
    %v128 = vpop.f32.mrb[0].mxu0
    %129 = vdwg.mxu0
    %v130 = vld [vmem:[%s1] sm:$0xff]
    %v131 = vld [vmem:[%s1 + $0x8] sm:$0xff]
    %v132 = vld [vmem:[%s1 + $0x10] sm:$0xff]
    %v133 = vld [vmem:[%s1 + $0x18] sm:$0xff]
    %v134 = vadd.f32 %v116, %v130
    %v135 = vadd.f32 %v119, %v131
    %v136 = vadd.f32 %v124, %v132
    %v137 = vadd.f32 %v127, %v133
    %v138 = vld [vmem:[%s4] sm:$0x1]
    %v139 = vld [vmem:[%s5] sm:$0x1]
    %v140 = vsel %vm74, %v134, 0.0
    %141 = vadd.xlane.f32.xlu0 %v140
    %v142 = vpop.xlane.xlu0 %141
    %v143 = vsel %vm74, %v135, 0.0
    %144 = vadd.xlane.f32.xlu0 %v143
    %v145 = vpop.xlane.xlu0 %144
    %v146 = vsel %vm74, %v136, 0.0
    %147 = vadd.xlane.f32.xlu0 %v146
    %v148 = vpop.xlane.xlu0 %147
    %v149 = vsel %vm74, %v137, 0.0
    %150 = vadd.xlane.f32.xlu0 %v149
    %v151 = vpop.xlane.xlu0 %150
    %v152 = vrcp.pop 32.0
    %v153 = vmul.f32 %v142, %v152
    %v154 = vmul.f32 %v145, %v152
    %v155 = vmul.f32 %v148, %v152
    %v156 = vmul.f32 %v151, %v152
    %v157 = vsub.f32 %v134, %v153
    %v158 = vsub.f32 %v135, %v154
    %v159 = vsub.f32 %v136, %v155
    %v160 = vsub.f32 %v137, %v156
    %v161 = vmul.f32 %v157, %v157
    %v162 = vmul.f32 %v158, %v158
    %v163 = vmul.f32 %v159, %v159
    %v164 = vmul.f32 %v160, %v160
    %v165 = vsel %vm74, %v161, 0.0
    %166 = vadd.xlane.f32.xlu0 %v165
    %v167 = vpop.xlane.xlu0 %166
    %v168 = vsel %vm74, %v162, 0.0
    %169 = vadd.xlane.f32.xlu0 %v168
    %v170 = vpop.xlane.xlu0 %169
    %v171 = vsel %vm74, %v163, 0.0
    %172 = vadd.xlane.f32.xlu0 %v171
    %v173 = vpop.xlane.xlu0 %172
    %v174 = vsel %vm74, %v164, 0.0
    %175 = vadd.xlane.f32.xlu0 %v174
    %v176 = vpop.xlane.xlu0 %175
    %v177 = vmul.f32 %v167, %v152
    %v178 = vmul.f32 %v170, %v152
    %v179 = vmul.f32 %v173, %v152
    %v180 = vmul.f32 %v176, %v152
    %v181 = vadd.f32 %v177, 1e-06
    %v182 = vadd.f32 %v178, 1e-06
    %v183 = vadd.f32 %v179, 1e-06
    %v184 = vadd.f32 %v180, 1e-06
    %v185 = vrsqrt.pop %v181
    %v186 = vrsqrt.pop %v182
    %v187 = vrsqrt.pop %v183
    %v188 = vrsqrt.pop %v184
    %v189 = vmul.f32 %v157, %v185
    %v190 = vmul.f32 %v158, %v186
    %v191 = vmul.f32 %v159, %v187
    %v192 = vmul.f32 %v160, %v188
    %v194 = vlaneseq
    %v195 = vshrl.u32 %v194, 7
    %v196 = vsub.s32 0, %v195
    %v197 = vrot.slane %v138, %v196
    %v199 = vmul.f32 %v189, %v197
    %v200 = vmul.f32 %v190, %v197
    %v201 = vmul.f32 %v191, %v197
    %v202 = vmul.f32 %v192, %v197
    %v204 = vlaneseq
    %v205 = vshrl.u32 %v204, 7
    %v206 = vsub.s32 0, %v205
    %v207 = vrot.slane %v139, %v206
    %v209 = vadd.f32 %v199, %v207
    %v210 = vadd.f32 %v200, %v207
    %v211 = vadd.f32 %v201, %v207
    %v212 = vadd.f32 %v202, %v207
    %v213 = vpack.c.bf16 %v210, %v209
    %v214 = vpack.c.bf16 %v212, %v211
    %v215 = vld [vmem:[%s6] sm:$0xf]
    %v216 = vld [vmem:[%s6 + $0x4] sm:$0xf]
    %v217 = vld [vmem:[%s6 + $0x8] sm:$0xf]
    %v218 = vld [vmem:[%s6 + $0xc] sm:$0xf]
    %v219 = vld [vmem:[%s7] sm:$0x1]
    %v221 = vlaneseq
    %v222 = vshrl.u32 %v221, 7
    %v223 = vsub.s32 0, %v222
    %v224 = vrot.slane %v219, %v223
    %v230 = vunpack.c.l.b16 %v215
    %v231 = vunpack.c.l.b16 %v216
    %v232 = vunpack.c.l.b16 %v217
    %v233 = vunpack.c.l.b16 %v218
    %v234 = vpack.c.b16 %v231, %v230
    %v235 = vpack.c.b16 %v233, %v232
    %v239 = vsel %vm74, %v213, 0
    %v242 = vsel %vm74, %v214, 0
    %244 = vmatprep.subr.bf16.mxu0 0
    %245 = vmatpush1.bf16.msra.mxu0 %v234
    %246 = vmatprep.subr.bf16.mxu0 0
    %247 = vmatpush1.bf16.msra.mxu0 %v235
    %248 = vmatprep.subr.bf16.mxu0 0
    %249 = vmatpush1.bf16.msra.mxu0 0
    %250 = vmatprep.subr.bf16.mxu0 0
    %251 = vmatpush1.bf16.msra.mxu0 0
    %252 = vmatprep.subr.bf16.mxu0 0
    %253 = vmatpush1.bf16.msra.mxu0 0
    %254 = vmatprep.subr.bf16.mxu0 0
    %255 = vmatpush1.bf16.msra.mxu0 0
    %256 = vmatprep.subr.bf16.mxu0 0
    %257 = vmatpush1.bf16.msra.mxu0 0
    %258 = vmatprep.subr.bf16.mxu0 0
    %259 = vmatpush1.bf16.msra.mxu0 0
    %260 = vmatprep.subr.bf16.mxu0 0
    %261 = vmatpush1.bf16.msra.mxu0 0
    %262 = vmatprep.subr.bf16.mxu0 0
    %263 = vmatpush1.bf16.msra.mxu0 0
    %264 = vmatprep.subr.bf16.mxu0 0
    %265 = vmatpush1.bf16.msra.mxu0 0
    %266 = vmatprep.subr.bf16.mxu0 0
    %267 = vmatpush1.bf16.msra.mxu0 0
    %268 = vmatprep.subr.bf16.mxu0 0
    %269 = vmatpush1.bf16.msra.mxu0 0
    %270 = vmatprep.subr.bf16.mxu0 0
    %271 = vmatpush1.bf16.msra.mxu0 0
    %272 = vmatprep.subr.bf16.mxu0 0
    %273 = vmatpush1.bf16.msra.mxu0 0
    %274 = vmatprep.subr.bf16.mxu0 0
    %275 = vmatpush1.bf16.msra.mxu0 0
    %276 = vmatprep.mubr.bf16.mxu0 0
    %277 = vmatmul.mubr.bf16.gmra.mrb[0].mxu0 %v239
    %v278 = vpop.f32.mrb[0].mxu0
    %v279 = vadd.f32 %v224, %v278
    %v280 = vpop.f32.mrb[0].mxu0
    %v281 = vpop.f32.mrb[0].mxu0
    %v282 = vadd.f32 %v224, %v281
    %v283 = vpop.f32.mrb[0].mxu0
    %284 = vmatprep.mubr.bf16.mxu0 0
    %285 = vmatmul.mubr.bf16.gmra.mrb[0].mxu0 %v242
    %v286 = vpop.f32.mrb[0].mxu0
    %v287 = vadd.f32 %v224, %v286
    %v288 = vpop.f32.mrb[0].mxu0
    %v289 = vpop.f32.mrb[0].mxu0
    %v290 = vadd.f32 %v224, %v289
    %v291 = vpop.f32.mrb[0].mxu0
    %292 = vdwg.mxu0
    %v293 = vmul.f32 %v279, 0.5
    %v294 = vmul.f32 %v282, 0.5
    %v295 = vmul.f32 %v287, 0.5
    %v296 = vmul.f32 %v290, 0.5
    %v297 = vmul.f32 %v279, 0.70710677
    %v298 = vmul.f32 %v282, 0.70710677
    %v299 = vmul.f32 %v287, 0.70710677
    %v300 = vmul.f32 %v290, 0.70710677
    %v301 = verf.f32.pop %v297
    %v302 = verf.f32.pop %v298
    %v303 = verf.f32.pop %v299
    %v304 = verf.f32.pop %v300
    %v305 = vadd.f32 %v301, 1.0
    %v306 = vadd.f32 %v302, 1.0
    %v307 = vadd.f32 %v303, 1.0
    %v308 = vadd.f32 %v304, 1.0
    %v309 = vmul.f32 %v293, %v305
    %v310 = vmul.f32 %v294, %v306
    %v311 = vmul.f32 %v295, %v307
    %v312 = vmul.f32 %v296, %v308
    %v313 = vpack.c.bf16 %v310, %v309
    %v314 = vpack.c.bf16 %v312, %v311
    %v315 = vld [vmem:[%s8] sm:$0xf]
    %v316 = vld [vmem:[%s8 + $0x4] sm:$0xf]
    %v317 = vld [vmem:[%s8 + $0x8] sm:$0xf]
    %v318 = vld [vmem:[%s8 + $0xc] sm:$0xf]
    %v319 = vld [vmem:[%s8 + $0x10] sm:$0xf]
    %v320 = vld [vmem:[%s8 + $0x14] sm:$0xf]
    %v321 = vld [vmem:[%s8 + $0x18] sm:$0xf]
    %v322 = vld [vmem:[%s8 + $0x1c] sm:$0xf]
    %v323 = vld [vmem:[%s8 + $0x20] sm:$0xf]
    %v324 = vld [vmem:[%s8 + $0x24] sm:$0xf]
    %v325 = vld [vmem:[%s8 + $0x28] sm:$0xf]
    %v326 = vld [vmem:[%s8 + $0x2c] sm:$0xf]
    %v327 = vld [vmem:[%s8 + $0x30] sm:$0xf]
    %v328 = vld [vmem:[%s8 + $0x34] sm:$0xf]
    %v329 = vld [vmem:[%s8 + $0x38] sm:$0xf]
    %v330 = vld [vmem:[%s8 + $0x3c] sm:$0xf]
    %v331 = vld [vmem:[%s9] sm:$0x1]
    %v333 = vlaneseq
    %v334 = vshrl.u32 %v333, 7
    %v335 = vsub.s32 0, %v334
    %v336 = vrot.slane %v331, %v335
    %v354 = vunpack.c.l.b16 %v315
    %v355 = vunpack.c.l.b16 %v316
    %v356 = vunpack.c.l.b16 %v317
    %v357 = vunpack.c.l.b16 %v318
    %v358 = vunpack.c.l.b16 %v319
    %v359 = vunpack.c.l.b16 %v320
    %v360 = vunpack.c.l.b16 %v321
    %v361 = vunpack.c.l.b16 %v322
    %v362 = vunpack.c.l.b16 %v323
    %v363 = vunpack.c.l.b16 %v324
    %v364 = vunpack.c.l.b16 %v325
    %v365 = vunpack.c.l.b16 %v326
    %v366 = vunpack.c.l.b16 %v327
    %v367 = vunpack.c.l.b16 %v328
    %v368 = vunpack.c.l.b16 %v329
    %v369 = vunpack.c.l.b16 %v330
    %v370 = vpack.c.b16 %v355, %v354
    %v371 = vpack.c.b16 %v357, %v356
    %v372 = vpack.c.b16 %v359, %v358
    %v373 = vpack.c.b16 %v361, %v360
    %v374 = vpack.c.b16 %v363, %v362
    %v375 = vpack.c.b16 %v365, %v364
    %v376 = vpack.c.b16 %v367, %v366
    %v377 = vpack.c.b16 %v369, %v368
    %386 = vmatprep.subr.bf16.mxu0 0
    %387 = vmatpush1.bf16.msra.mxu0 %v370
    %388 = vmatprep.subr.bf16.mxu0 0
    %389 = vmatpush1.bf16.msra.mxu0 %v371
    %390 = vmatprep.subr.bf16.mxu0 0
    %391 = vmatpush1.bf16.msra.mxu0 %v372
    %392 = vmatprep.subr.bf16.mxu0 0
    %393 = vmatpush1.bf16.msra.mxu0 %v373
    %394 = vmatprep.subr.bf16.mxu0 0
    %395 = vmatpush1.bf16.msra.mxu0 %v374
    %396 = vmatprep.subr.bf16.mxu0 0
    %397 = vmatpush1.bf16.msra.mxu0 %v375
    %398 = vmatprep.subr.bf16.mxu0 0
    %399 = vmatpush1.bf16.msra.mxu0 %v376
    %400 = vmatprep.subr.bf16.mxu0 0
    %401 = vmatpush1.bf16.msra.mxu0 %v377
    %402 = vmatprep.subr.bf16.mxu0 0
    %403 = vmatpush1.bf16.msra.mxu0 0
    %404 = vmatprep.subr.bf16.mxu0 0
    %405 = vmatpush1.bf16.msra.mxu0 0
    %406 = vmatprep.subr.bf16.mxu0 0
    %407 = vmatpush1.bf16.msra.mxu0 0
    %408 = vmatprep.subr.bf16.mxu0 0
    %409 = vmatpush1.bf16.msra.mxu0 0
    %410 = vmatprep.subr.bf16.mxu0 0
    %411 = vmatpush1.bf16.msra.mxu0 0
    %412 = vmatprep.subr.bf16.mxu0 0
    %413 = vmatpush1.bf16.msra.mxu0 0
    %414 = vmatprep.subr.bf16.mxu0 0
    %415 = vmatpush1.bf16.msra.mxu0 0
    %416 = vmatprep.subr.bf16.mxu0 0
    %417 = vmatpush1.bf16.msra.mxu0 0
    %418 = vmatprep.mubr.bf16.mxu0 0
    %419 = vmatmul.mubr.bf16.gmra.mrb[0].mxu0 %v313
    %v420 = vpop.f32.mrb[0].mxu0
    %v421 = vadd.f32 %v336, %v420
    %v422 = vpop.f32.mrb[0].mxu0
    %v423 = vpop.f32.mrb[0].mxu0
    %v424 = vadd.f32 %v336, %v423
    %v425 = vpop.f32.mrb[0].mxu0
    %426 = vmatprep.mubr.bf16.mxu0 0
    %427 = vmatmul.mubr.bf16.gmra.mrb[0].mxu0 %v314
    %v428 = vpop.f32.mrb[0].mxu0
    %v429 = vadd.f32 %v336, %v428
    %v430 = vpop.f32.mrb[0].mxu0
    %v431 = vpop.f32.mrb[0].mxu0
    %v432 = vadd.f32 %v336, %v431
    %v433 = vpop.f32.mrb[0].mxu0
    %434 = vdwg.mxu0
    %v435 = vadd.f32 %v421, %v134
    %v436 = vadd.f32 %v424, %v135
    %v437 = vadd.f32 %v429, %v136
    %v438 = vadd.f32 %v432, %v137
    %439 = vst.msk [vmem:[#allocation2] sm:$0xff] %vm74, %v435
    %440 = vst.msk [vmem:[#allocation2 + $0x8] sm:$0xff] %vm74, %v436
    %441 = vst.msk [vmem:[#allocation2 + $0x10] sm:$0xff] %vm74, %v437
    %442 = vst.msk [vmem:[#allocation2 + $0x18] sm:$0xff] %vm74, %v438
    // Predicated region
    $region42: #{transformer_block_pallas.5} parent=1 // pred_check
      _
    $region43: #{transformer_block_pallas.5} parent=1 // pred_check_branch
      %444 = sbr.rel (0) target = $region45
    $region44: #{transformer_block_pallas.5} parent=1 // pred_region
      %s446 = ssub.s32 512, 512
      %447 = vsyncadd [#allocation3], %s446
      %s448 = sshll.u32 [#allocation2], 4
      %s449 = int_to_ptr.vmem [resolvable:$true] %s448
      %454 = dma.vmem_to_hbm [thread:$0]  %s449, 512, %s10, [#allocation3], 128, 128, 8
    $region45: #{transformer_block_pallas.5} parent=1 // pred_fallthru
      _
    // Predicated region
    $region46: #{transformer_block_pallas.5} parent=1 // pred_check
      _
    $region47: #{transformer_block_pallas.5} parent=1 // pred_check_branch
      %456 = sbr.rel (0) target = $region49
    $region48: #{transformer_block_pallas.5} parent=1 // pred_region
      %457 = dma.done [#allocation3], 512
    $region49: #{transformer_block_pallas.5} parent=1 // pred_fallthru
      _
    %458 = vsyncpa [#allocation3], 1

// kernel: transformer_block_pallas.4
$region0: #{transformer_block_pallas.4}
  #allocation0 [shape = 'u32[]', space=smem, size = 0x4, offset = 0x4, fixed_abs, tag = 'smem constant byte address 0x4 - core index']
  #allocation1 [shape = 'u32[144,128]{1,0:T(1,128)}', space=vmem, size = 0x12000, scoped, tag = 'internal scratch']
  %s0 = inlined_call_operand.vmem [shape: bf16[32,32], index: 0, kind: input, shape index: {}]
  %s1 = inlined_call_operand.vmem [shape: bf16[7,32,32], index: 1, kind: input, shape index: {}]
  %s2 = inlined_call_operand.vmem [shape: bf16[7,32,32], index: 2, kind: input, shape index: {}]
  %s3 = inlined_call_operand.vmem [shape: f32[7,32,1], index: 3, kind: input, shape index: {}]
  %s4 = inlined_call_operand.vmem [shape: bf16[32,32], index: 4, kind: input, shape index: {}]
  %s5 = inlined_call_operand.vmem [shape: bf16[32,32], index: 5, kind: output, shape index: {}]
  %s6 = sld [smem:[#allocation0]]
  $region30: #{transformer_block_pallas.4} parent=0
    _
  %s8 = ssub.s32 1, %s6
  %s9 = scalar_select 0, %s8, %s6
  // Predicated region
  $region2: #{transformer_block_pallas.4} parent=0 // pred_check
    _
  $region3: #{transformer_block_pallas.4} parent=0 // pred_check_branch
    %11 = sbr.rel (0) target = $region5
  $region4: #{transformer_block_pallas.4} parent=0 // pred_region
    _
  $region5: #{transformer_block_pallas.4} parent=0 // pred_fallthru
    _
  // Predicated region
  $region6: #{transformer_block_pallas.4} parent=0 // pred_check
    _
  $region7: #{transformer_block_pallas.4} parent=0 // pred_check_branch
    %13 = sbr.rel (0) target = $region9
  $region8: #{transformer_block_pallas.4} parent=0 // pred_region
    _
  $region9: #{transformer_block_pallas.4} parent=0 // pred_fallthru
    _
  // Predicated region
  $region10: #{transformer_block_pallas.4} parent=0 // pred_check
    _
  $region11: #{transformer_block_pallas.4} parent=0 // pred_check_branch
    %15 = sbr.rel (0) target = $region13
  $region12: #{transformer_block_pallas.4} parent=0 // pred_region
    _
  $region13: #{transformer_block_pallas.4} parent=0 // pred_fallthru
    _
  // Predicated region
  $region14: #{transformer_block_pallas.4} parent=0 // pred_check
    _
  $region15: #{transformer_block_pallas.4} parent=0 // pred_check_branch
    %17 = sbr.rel (0) target = $region17
  $region16: #{transformer_block_pallas.4} parent=0 // pred_region
    _
  $region17: #{transformer_block_pallas.4} parent=0 // pred_fallthru
    _
  // Predicated region
  $region18: #{transformer_block_pallas.4} parent=0 // pred_check
    _
  $region19: #{transformer_block_pallas.4} parent=0 // pred_check_branch
    %19 = sbr.rel (0) target = $region21
  $region20: #{transformer_block_pallas.4} parent=0 // pred_region
    _
  $region21: #{transformer_block_pallas.4} parent=0 // pred_fallthru
    _
  %v21 = vld [vmem:[%s0] sm:$0xf]
  %v22 = vld [vmem:[%s0 + $0x4] sm:$0xf]
  %v23 = vld [vmem:[%s0 + $0x8] sm:$0xf]
  %v24 = vld [vmem:[%s0 + $0xc] sm:$0xf]
  %v25 = vunpack.c.l.bf16 %v21
  %v26 = vunpack.c.l.bf16 %v22
  %v27 = vunpack.c.l.bf16 %v23
  %v28 = vunpack.c.l.bf16 %v24
  %v29 = vld [vmem:[%s4] sm:$0xf]
  %v30 = vld [vmem:[%s4 + $0x4] sm:$0xf]
  %v31 = vld [vmem:[%s4 + $0x8] sm:$0xf]
  %v32 = vld [vmem:[%s4 + $0xc] sm:$0xf]
  %v33 = vld [vmem:[%s1] sm:$0xf]
  %v34 = vld [vmem:[%s1 + $0x4] sm:$0xf]
  %v35 = vld [vmem:[%s1 + $0x8] sm:$0xf]
  %v36 = vld [vmem:[%s1 + $0xc] sm:$0xf]
  %v37 = vunpack.c.l.bf16 %v33
  %v38 = vunpack.c.l.bf16 %v34
  %v39 = vunpack.c.l.bf16 %v35
  %v40 = vunpack.c.l.bf16 %v36
  %v41 = vmul.f32 %v25, %v37
  %v42 = vmul.f32 %v26, %v38
  %v43 = vmul.f32 %v27, %v39
  %v44 = vmul.f32 %v28, %v40
  %v45 = vpack.c.bf16 %v42, %v41
  %v46 = vpack.c.bf16 %v44, %v43
  %v47 = vld [vmem:[%s3] sm:$0xff]
  %v48 = vld [vmem:[%s3 + $0x8] sm:$0xff]
  %v49 = vld [vmem:[%s3 + $0x10] sm:$0xff]
  %v50 = vld [vmem:[%s3 + $0x18] sm:$0xff]
  %52 = vset.pattern.permute.xlu0 0
  %53 = vperm.xlu0 %52, %v47
  %v54 = vpop.permute.xlu0 %53
  %57 = vset.pattern.permute.xlu0 0
  %58 = vperm.xlu0 %57, %v48
  %v59 = vpop.permute.xlu0 %58
  %62 = vset.pattern.permute.xlu0 0
  %63 = vperm.xlu0 %62, %v49
  %v64 = vpop.permute.xlu0 %63
  %67 = vset.pattern.permute.xlu0 0
  %68 = vperm.xlu0 %67, %v50
  %v69 = vpop.permute.xlu0 %68
  %v75 = vunpack.c.l.b16 %v29
  %v76 = vunpack.c.l.b16 %v30
  %v77 = vunpack.c.l.b16 %v31
  %v78 = vunpack.c.l.b16 %v32
  %v79 = vpack.c.b16 %v76, %v75
  %v80 = vpack.c.b16 %v78, %v77
  %vm83 = vcmask 261120
  %v85 = vsel %vm83, %v45, 0
  %v88 = vsel %vm83, %v46, 0
  %90 = vmatprep.subr.bf16.mxu0 0
  %91 = vmatpush1.bf16.msra.mxu0 %v79
  %92 = vmatprep.subr.bf16.mxu0 0
  %93 = vmatpush1.bf16.msra.mxu0 %v80
  %94 = vmatprep.subr.bf16.mxu0 0
  %95 = vmatpush1.bf16.msra.mxu0 0
  %96 = vmatprep.subr.bf16.mxu0 0
  %97 = vmatpush1.bf16.msra.mxu0 0
  %98 = vmatprep.subr.bf16.mxu0 0
  %99 = vmatpush1.bf16.msra.mxu0 0
  %100 = vmatprep.subr.bf16.mxu0 0
  %101 = vmatpush1.bf16.msra.mxu0 0
  %102 = vmatprep.subr.bf16.mxu0 0
  %103 = vmatpush1.bf16.msra.mxu0 0
  %104 = vmatprep.subr.bf16.mxu0 0
  %105 = vmatpush1.bf16.msra.mxu0 0
  %106 = vmatprep.subr.bf16.mxu0 0
  %107 = vmatpush1.bf16.msra.mxu0 0
  %108 = vmatprep.subr.bf16.mxu0 0
  %109 = vmatpush1.bf16.msra.mxu0 0
  %110 = vmatprep.subr.bf16.mxu0 0
  %111 = vmatpush1.bf16.msra.mxu0 0
  %112 = vmatprep.subr.bf16.mxu0 0
  %113 = vmatpush1.bf16.msra.mxu0 0
  %114 = vmatprep.subr.bf16.mxu0 0
  %115 = vmatpush1.bf16.msra.mxu0 0
  %116 = vmatprep.subr.bf16.mxu0 0
  %117 = vmatpush1.bf16.msra.mxu0 0
  %118 = vmatprep.subr.bf16.mxu0 0
  %119 = vmatpush1.bf16.msra.mxu0 0
  %120 = vmatprep.subr.bf16.mxu0 0
  %121 = vmatpush1.bf16.msra.mxu0 0
  %122 = vmatprep.mubr.bf16.mxu0 0
  %123 = vmatmul.mubr.bf16.gmra.mrb[0].mxu0 %v85
  %v124 = vpop.f32.mrb[0].mxu0
  %v125 = vadd.f32 %v54, %v124
  %v126 = vpop.f32.mrb[0].mxu0
  %v127 = vpop.f32.mrb[0].mxu0
  %v128 = vadd.f32 %v59, %v127
  %v129 = vpop.f32.mrb[0].mxu0
  %130 = vmatprep.mubr.bf16.mxu0 0
  %131 = vmatmul.mubr.bf16.gmra.mrb[0].mxu0 %v88
  %v132 = vpop.f32.mrb[0].mxu0
  %v133 = vadd.f32 %v64, %v132
  %v134 = vpop.f32.mrb[0].mxu0
  %v135 = vpop.f32.mrb[0].mxu0
  %v136 = vadd.f32 %v69, %v135
  %v137 = vpop.f32.mrb[0].mxu0
  %138 = vdwg.mxu0
  %v139 = vmax.f32 %v125, -3.4028235e+38
  %v140 = vmax.f32 %v128, -3.4028235e+38
  %v141 = vmax.f32 %v133, -3.4028235e+38
  %v142 = vmax.f32 %v136, -3.4028235e+38
  %s143 = scalar_lea.vmem %s1, 16
  %v144 = vld [vmem:[%s143] sm:$0xf]
  %v145 = vld [vmem:[%s143 + $0x4] sm:$0xf]
  %v146 = vld [vmem:[%s143 + $0x8] sm:$0xf]
  %v147 = vld [vmem:[%s143 + $0xc] sm:$0xf]
  %v148 = vunpack.c.l.bf16 %v144
  %v149 = vunpack.c.l.bf16 %v145
  %v150 = vunpack.c.l.bf16 %v146
  %v151 = vunpack.c.l.bf16 %v147
  %v152 = vmul.f32 %v25, %v148
  %v153 = vmul.f32 %v26, %v149
  %v154 = vmul.f32 %v27, %v150
  %v155 = vmul.f32 %v28, %v151
  %v156 = vpack.c.bf16 %v153, %v152
  %v157 = vpack.c.bf16 %v155, %v154
  %s158 = scalar_lea.vmem %s3, 32
  %v159 = vld [vmem:[%s158] sm:$0xff]
  %v160 = vld [vmem:[%s158 + $0x8] sm:$0xff]
  %v161 = vld [vmem:[%s158 + $0x10] sm:$0xff]
  %v162 = vld [vmem:[%s158 + $0x18] sm:$0xff]
  %164 = vset.pattern.permute.xlu0 0
  %165 = vperm.xlu0 %164, %v159
  %v166 = vpop.permute.xlu0 %165
  %169 = vset.pattern.permute.xlu0 0
  %170 = vperm.xlu0 %169, %v160
  %v171 = vpop.permute.xlu0 %170
  %174 = vset.pattern.permute.xlu0 0
  %175 = vperm.xlu0 %174, %v161
  %v176 = vpop.permute.xlu0 %175
  %179 = vset.pattern.permute.xlu0 0
  %180 = vperm.xlu0 %179, %v162
  %v181 = vpop.permute.xlu0 %180
  %v184 = vsel %vm83, %v156, 0
  %v187 = vsel %vm83, %v157, 0
  %189 = vmatprep.subr.bf16.mxu0 0
  %190 = vmatpush1.bf16.msra.mxu0 %v79
  %191 = vmatprep.subr.bf16.mxu0 0
  %192 = vmatpush1.bf16.msra.mxu0 %v80
  %193 = vmatprep.subr.bf16.mxu0 0
  %194 = vmatpush1.bf16.msra.mxu0 0
  %195 = vmatprep.subr.bf16.mxu0 0
  %196 = vmatpush1.bf16.msra.mxu0 0
  %197 = vmatprep.subr.bf16.mxu0 0
  %198 = vmatpush1.bf16.msra.mxu0 0
  %199 = vmatprep.subr.bf16.mxu0 0
  %200 = vmatpush1.bf16.msra.mxu0 0
  %201 = vmatprep.subr.bf16.mxu0 0
  %202 = vmatpush1.bf16.msra.mxu0 0
  %203 = vmatprep.subr.bf16.mxu0 0
  %204 = vmatpush1.bf16.msra.mxu0 0
  %205 = vmatprep.subr.bf16.mxu0 0
  %206 = vmatpush1.bf16.msra.mxu0 0
  %207 = vmatprep.subr.bf16.mxu0 0
  %208 = vmatpush1.bf16.msra.mxu0 0
  %209 = vmatprep.subr.bf16.mxu0 0
  %210 = vmatpush1.bf16.msra.mxu0 0
  %211 = vmatprep.subr.bf16.mxu0 0
  %212 = vmatpush1.bf16.msra.mxu0 0
  %213 = vmatprep.subr.bf16.mxu0 0
  %214 = vmatpush1.bf16.msra.mxu0 0
  %215 = vmatprep.subr.bf16.mxu0 0
  %216 = vmatpush1.bf16.msra.mxu0 0
  %217 = vmatprep.subr.bf16.mxu0 0
  %218 = vmatpush1.bf16.msra.mxu0 0
  %219 = vmatprep.subr.bf16.mxu0 0
  %220 = vmatpush1.bf16.msra.mxu0 0
  %221 = vmatprep.mubr.bf16.mxu0 0
  %222 = vmatmul.mubr.bf16.gmra.mrb[0].mxu0 %v184
  %v223 = vpop.f32.mrb[0].mxu0
  %v224 = vadd.f32 %v166, %v223
  %v225 = vpop.f32.mrb[0].mxu0
  %v226 = vpop.f32.mrb[0].mxu0
  %v227 = vadd.f32 %v171, %v226
  %v228 = vpop.f32.mrb[0].mxu0
  %229 = vmatprep.mubr.bf16.mxu0 0
  %230 = vmatmul.mubr.bf16.gmra.mrb[0].mxu0 %v187
  %v231 = vpop.f32.mrb[0].mxu0
  %v232 = vadd.f32 %v176, %v231
  %v233 = vpop.f32.mrb[0].mxu0
  %v234 = vpop.f32.mrb[0].mxu0
  %v235 = vadd.f32 %v181, %v234
  %v236 = vpop.f32.mrb[0].mxu0
  %237 = vdwg.mxu0
  %v238 = vmax.f32 %v139, %v224
  %v239 = vmax.f32 %v140, %v227
  %v240 = vmax.f32 %v141, %v232
  %v241 = vmax.f32 %v142, %v235
  %s242 = scalar_lea.vmem %s1, 32
  %v243 = vld [vmem:[%s242] sm:$0xf]
  %v244 = vld [vmem:[%s242 + $0x4] sm:$0xf]
  %v245 = vld [vmem:[%s242 + $0x8] sm:$0xf]
  %v246 = vld [vmem:[%s242 + $0xc] sm:$0xf]
  %v247 = vunpack.c.l.bf16 %v243
  %v248 = vunpack.c.l.bf16 %v244
  %v249 = vunpack.c.l.bf16 %v245
  %v250 = vunpack.c.l.bf16 %v246
  %v251 = vmul.f32 %v25, %v247
  %v252 = vmul.f32 %v26, %v248
  %v253 = vmul.f32 %v27, %v249
  %v254 = vmul.f32 %v28, %v250
  %v255 = vpack.c.bf16 %v252, %v251
  %v256 = vpack.c.bf16 %v254, %v253
  %s257 = scalar_lea.vmem %s3, 64
  %v258 = vld [vmem:[%s257] sm:$0xff]
  %v259 = vld [vmem:[%s257 + $0x8] sm:$0xff]
  %v260 = vld [vmem:[%s257 + $0x10] sm:$0xff]
  %v261 = vld [vmem:[%s257 + $0x18] sm:$0xff]
  %263 = vset.pattern.permute.xlu0 0
  %264 = vperm.xlu0 %263, %v258
  %v265 = vpop.permute.xlu0 %264
  %268 = vset.pattern.permute.xlu0 0
  %269 = vperm.xlu0 %268, %v259
  %v270 = vpop.permute.xlu0 %269
  %273 = vset.pattern.permute.xlu0 0
  %274 = vperm.xlu0 %273, %v260
  %v275 = vpop.permute.xlu0 %274
  %278 = vset.pattern.permute.xlu0 0
  %279 = vperm.xlu0 %278, %v261
  %v280 = vpop.permute.xlu0 %279
  %v283 = vsel %vm83, %v255, 0
  %v286 = vsel %vm83, %v256, 0
  %288 = vmatprep.subr.bf16.mxu0 0
  %289 = vmatpush1.bf16.msra.mxu0 %v79
  %290 = vmatprep.subr.bf16.mxu0 0
  %291 = vmatpush1.bf16.msra.mxu0 %v80
  %292 = vmatprep.subr.bf16.mxu0 0
  %293 = vmatpush1.bf16.msra.mxu0 0
  %294 = vmatprep.subr.bf16.mxu0 0
  %295 = vmatpush1.bf16.msra.mxu0 0
  %296 = vmatprep.subr.bf16.mxu0 0
  %297 = vmatpush1.bf16.msra.mxu0 0
  %298 = vmatprep.subr.bf16.mxu0 0
  %299 = vmatpush1.bf16.msra.mxu0 0
  %300 = vmatprep.subr.bf16.mxu0 0
  %301 = vmatpush1.bf16.msra.mxu0 0
  %302 = vmatprep.subr.bf16.mxu0 0
  %303 = vmatpush1.bf16.msra.mxu0 0
  %304 = vmatprep.subr.bf16.mxu0 0
  %305 = vmatpush1.bf16.msra.mxu0 0
  %306 = vmatprep.subr.bf16.mxu0 0
  %307 = vmatpush1.bf16.msra.mxu0 0
  %308 = vmatprep.subr.bf16.mxu0 0
  %309 = vmatpush1.bf16.msra.mxu0 0
  %310 = vmatprep.subr.bf16.mxu0 0
  %311 = vmatpush1.bf16.msra.mxu0 0
  %312 = vmatprep.subr.bf16.mxu0 0
  %313 = vmatpush1.bf16.msra.mxu0 0
  %314 = vmatprep.subr.bf16.mxu0 0
  %315 = vmatpush1.bf16.msra.mxu0 0
  %316 = vmatprep.subr.bf16.mxu0 0
  %317 = vmatpush1.bf16.msra.mxu0 0
  %318 = vmatprep.subr.bf16.mxu0 0
  %319 = vmatpush1.bf16.msra.mxu0 0
  %320 = vmatprep.mubr.bf16.mxu0 0
  %321 = vmatmul.mubr.bf16.gmra.mrb[0].mxu0 %v283
  %v322 = vpop.f32.mrb[0].mxu0
  %v323 = vadd.f32 %v265, %v322
  %v324 = vpop.f32.mrb[0].mxu0
  %v325 = vpop.f32.mrb[0].mxu0
  %v326 = vadd.f32 %v270, %v325
  %v327 = vpop.f32.mrb[0].mxu0
  %328 = vmatprep.mubr.bf16.mxu0 0
  %329 = vmatmul.mubr.bf16.gmra.mrb[0].mxu0 %v286
  %v330 = vpop.f32.mrb[0].mxu0
  %v331 = vadd.f32 %v275, %v330
  %v332 = vpop.f32.mrb[0].mxu0
  %v333 = vpop.f32.mrb[0].mxu0
  %v334 = vadd.f32 %v280, %v333
  %v335 = vpop.f32.mrb[0].mxu0
  %336 = vdwg.mxu0
  %v337 = vmax.f32 %v238, %v323
  %v338 = vmax.f32 %v239, %v326
  %v339 = vmax.f32 %v240, %v331
  %v340 = vmax.f32 %v241, %v334
  %s341 = scalar_lea.vmem %s1, 48
  %v342 = vld [vmem:[%s341] sm:$0xf]
  %v343 = vld [vmem:[%s341 + $0x4] sm:$0xf]
  %v344 = vld [vmem:[%s341 + $0x8] sm:$0xf]
  %v345 = vld [vmem:[%s341 + $0xc] sm:$0xf]
  %v346 = vunpack.c.l.bf16 %v342
  %v347 = vunpack.c.l.bf16 %v343
  %v348 = vunpack.c.l.bf16 %v344
  %v349 = vunpack.c.l.bf16 %v345
  %v350 = vmul.f32 %v25, %v346
  %v351 = vmul.f32 %v26, %v347
  %v352 = vmul.f32 %v27, %v348
  %v353 = vmul.f32 %v28, %v349
  %v354 = vpack.c.bf16 %v351, %v350
  %v355 = vpack.c.bf16 %v353, %v352
  %s356 = scalar_lea.vmem %s3, 96
  %v357 = vld [vmem:[%s356] sm:$0xff]
  %v358 = vld [vmem:[%s356 + $0x8] sm:$0xff]
  %v359 = vld [vmem:[%s356 + $0x10] sm:$0xff]
  %v360 = vld [vmem:[%s356 + $0x18] sm:$0xff]
  %362 = vset.pattern.permute.xlu0 0
  %363 = vperm.xlu0 %362, %v357
  %v364 = vpop.permute.xlu0 %363
  %367 = vset.pattern.permute.xlu0 0
  %368 = vperm.xlu0 %367, %v358
  %v369 = vpop.permute.xlu0 %368
  %372 = vset.pattern.permute.xlu0 0
  %373 = vperm.xlu0 %372, %v359
  %v374 = vpop.permute.xlu0 %373
  %377 = vset.pattern.permute.xlu0 0
  %378 = vperm.xlu0 %377, %v360
  %v379 = vpop.permute.xlu0 %378
  %v382 = vsel %vm83, %v354, 0
  %v385 = vsel %vm83, %v355, 0
  %387 = vmatprep.subr.bf16.mxu0 0
  %388 = vmatpush1.bf16.msra.mxu0 %v79
  %389 = vmatprep.subr.bf16.mxu0 0
  %390 = vmatpush1.bf16.msra.mxu0 %v80
  %391 = vmatprep.subr.bf16.mxu0 0
  %392 = vmatpush1.bf16.msra.mxu0 0
  %393 = vmatprep.subr.bf16.mxu0 0
  %394 = vmatpush1.bf16.msra.mxu0 0
  %395 = vmatprep.subr.bf16.mxu0 0
  %396 = vmatpush1.bf16.msra.mxu0 0
  %397 = vmatprep.subr.bf16.mxu0 0
  %398 = vmatpush1.bf16.msra.mxu0 0
  %399 = vmatprep.subr.bf16.mxu0 0
  %400 = vmatpush1.bf16.msra.mxu0 0
  %401 = vmatprep.subr.bf16.mxu0 0
  %402 = vmatpush1.bf16.msra.mxu0 0
  %403 = vmatprep.subr.bf16.mxu0 0
  %404 = vmatpush1.bf16.msra.mxu0 0
  %405 = vmatprep.subr.bf16.mxu0 0
  %406 = vmatpush1.bf16.msra.mxu0 0
  %407 = vmatprep.subr.bf16.mxu0 0
  %408 = vmatpush1.bf16.msra.mxu0 0
  %409 = vmatprep.subr.bf16.mxu0 0
  %410 = vmatpush1.bf16.msra.mxu0 0
  %411 = vmatprep.subr.bf16.mxu0 0
  %412 = vmatpush1.bf16.msra.mxu0 0
  %413 = vmatprep.subr.bf16.mxu0 0
  %414 = vmatpush1.bf16.msra.mxu0 0
  %415 = vmatprep.subr.bf16.mxu0 0
  %416 = vmatpush1.bf16.msra.mxu0 0
  %417 = vmatprep.subr.bf16.mxu0 0
  %418 = vmatpush1.bf16.msra.mxu0 0
  %419 = vmatprep.mubr.bf16.mxu0 0
  %420 = vmatmul.mubr.bf16.gmra.mrb[0].mxu0 %v382
  %v421 = vpop.f32.mrb[0].mxu0
  %v422 = vadd.f32 %v364, %v421
  %v423 = vpop.f32.mrb[0].mxu0
  %v424 = vpop.f32.mrb[0].mxu0
  %v425 = vadd.f32 %v369, %v424
  %v426 = vpop.f32.mrb[0].mxu0
  %427 = vmatprep.mubr.bf16.mxu0 0
  %428 = vmatmul.mubr.bf16.gmra.mrb[0].mxu0 %v385
  %v429 = vpop.f32.mrb[0].mxu0
  %v430 = vadd.f32 %v374, %v429
  %v431 = vpop.f32.mrb[0].mxu0
  %v432 = vpop.f32.mrb[0].mxu0
  %v433 = vadd.f32 %v379, %v432
  %v434 = vpop.f32.mrb[0].mxu0
  %435 = vdwg.mxu0
  %v436 = vmax.f32 %v337, %v422
  %v437 = vmax.f32 %v338, %v425
  %v438 = vmax.f32 %v339, %v430
  %v439 = vmax.f32 %v340, %v433
  %s440 = scalar_lea.vmem %s1, 64
  %v441 = vld [vmem:[%s440] sm:$0xf]
  %v442 = vld [vmem:[%s440 + $0x4] sm:$0xf]
  %v443 = vld [vmem:[%s440 + $0x8] sm:$0xf]
  %v444 = vld [vmem:[%s440 + $0xc] sm:$0xf]
  %v445 = vunpack.c.l.bf16 %v441
  %v446 = vunpack.c.l.bf16 %v442
  %v447 = vunpack.c.l.bf16 %v443
  %v448 = vunpack.c.l.bf16 %v444
  %v449 = vmul.f32 %v25, %v445
  %v450 = vmul.f32 %v26, %v446
  %v451 = vmul.f32 %v27, %v447
  %v452 = vmul.f32 %v28, %v448
  %v453 = vpack.c.bf16 %v450, %v449
  %v454 = vpack.c.bf16 %v452, %v451
  %s455 = scalar_lea.vmem %s3, 128
  %v456 = vld [vmem:[%s455] sm:$0xff]
  %v457 = vld [vmem:[%s455 + $0x8] sm:$0xff]
  %v458 = vld [vmem:[%s455 + $0x10] sm:$0xff]
  %v459 = vld [vmem:[%s455 + $0x18] sm:$0xff]
  %461 = vset.pattern.permute.xlu0 0
  %462 = vperm.xlu0 %461, %v456
  %v463 = vpop.permute.xlu0 %462
  %466 = vset.pattern.permute.xlu0 0
  %467 = vperm.xlu0 %466, %v457
  %v468 = vpop.permute.xlu0 %467
  %471 = vset.pattern.permute.xlu0 0
  %472 = vperm.xlu0 %471, %v458
  %v473 = vpop.permute.xlu0 %472
  %476 = vset.pattern.permute.xlu0 0
  %477 = vperm.xlu0 %476, %v459
  %v478 = vpop.permute.xlu0 %477
  %v481 = vsel %vm83, %v453, 0
  %v484 = vsel %vm83, %v454, 0
  %486 = vmatprep.subr.bf16.mxu0 0
  %487 = vmatpush1.bf16.msra.mxu0 %v79
  %488 = vmatprep.subr.bf16.mxu0 0
  %489 = vmatpush1.bf16.msra.mxu0 %v80
  %490 = vmatprep.subr.bf16.mxu0 0
  %491 = vmatpush1.bf16.msra.mxu0 0
  %492 = vmatprep.subr.bf16.mxu0 0
  %493 = vmatpush1.bf16.msra.mxu0 0
  %494 = vmatprep.subr.bf16.mxu0 0
  %495 = vmatpush1.bf16.msra.mxu0 0
  %496 = vmatprep.subr.bf16.mxu0 0
  %497 = vmatpush1.bf16.msra.mxu0 0
  %498 = vmatprep.subr.bf16.mxu0 0
  %499 = vmatpush1.bf16.msra.mxu0 0
  %500 = vmatprep.subr.bf16.mxu0 0
  %501 = vmatpush1.bf16.msra.mxu0 0
  %502 = vmatprep.subr.bf16.mxu0 0
  %503 = vmatpush1.bf16.msra.mxu0 0
  %504 = vmatprep.subr.bf16.mxu0 0
  %505 = vmatpush1.bf16.msra.mxu0 0
  %506 = vmatprep.subr.bf16.mxu0 0
  %507 = vmatpush1.bf16.msra.mxu0 0
  %508 = vmatprep.subr.bf16.mxu0 0
  %509 = vmatpush1.bf16.msra.mxu0 0
  %510 = vmatprep.subr.bf16.mxu0 0
  %511 = vmatpush1.bf16.msra.mxu0 0
  %512 = vmatprep.subr.bf16.mxu0 0
  %513 = vmatpush1.bf16.msra.mxu0 0
  %514 = vmatprep.subr.bf16.mxu0 0
  %515 = vmatpush1.bf16.msra.mxu0 0
  %516 = vmatprep.subr.bf16.mxu0 0
  %517 = vmatpush1.bf16.msra.mxu0 0
  %518 = vmatprep.mubr.bf16.mxu0 0
  %519 = vmatmul.mubr.bf16.gmra.mrb[0].mxu0 %v481
  %v520 = vpop.f32.mrb[0].mxu0
  %v521 = vadd.f32 %v463, %v520
  %v522 = vpop.f32.mrb[0].mxu0
  %v523 = vpop.f32.mrb[0].mxu0
  %v524 = vadd.f32 %v468, %v523
  %v525 = vpop.f32.mrb[0].mxu0
  %526 = vmatprep.mubr.bf16.mxu0 0
  %527 = vmatmul.mubr.bf16.gmra.mrb[0].mxu0 %v484
  %v528 = vpop.f32.mrb[0].mxu0
  %v529 = vadd.f32 %v473, %v528
  %v530 = vpop.f32.mrb[0].mxu0
  %v531 = vpop.f32.mrb[0].mxu0
  %v532 = vadd.f32 %v478, %v531
  %v533 = vpop.f32.mrb[0].mxu0
  %534 = vdwg.mxu0
  %v535 = vmax.f32 %v436, %v521
  %v536 = vmax.f32 %v437, %v524
  %v537 = vmax.f32 %v438, %v529
  %v538 = vmax.f32 %v439, %v532
  %s539 = scalar_lea.vmem %s1, 80
  %v540 = vld [vmem:[%s539] sm:$0xf]
  %v541 = vld [vmem:[%s539 + $0x4] sm:$0xf]
  %v542 = vld [vmem:[%s539 + $0x8] sm:$0xf]
  %v543 = vld [vmem:[%s539 + $0xc] sm:$0xf]
  %v544 = vunpack.c.l.bf16 %v540
  %v545 = vunpack.c.l.bf16 %v541
  %v546 = vunpack.c.l.bf16 %v542
  %v547 = vunpack.c.l.bf16 %v543
  %v548 = vmul.f32 %v25, %v544
  %v549 = vmul.f32 %v26, %v545
  %v550 = vmul.f32 %v27, %v546
  %v551 = vmul.f32 %v28, %v547
  %v552 = vpack.c.bf16 %v549, %v548
  %v553 = vpack.c.bf16 %v551, %v550
  %s554 = scalar_lea.vmem %s3, 160
  %v555 = vld [vmem:[%s554] sm:$0xff]
  %v556 = vld [vmem:[%s554 + $0x8] sm:$0xff]
  %v557 = vld [vmem:[%s554 + $0x10] sm:$0xff]
  %v558 = vld [vmem:[%s554 + $0x18] sm:$0xff]
  %560 = vset.pattern.permute.xlu0 0
  %561 = vperm.xlu0 %560, %v555
  %v562 = vpop.permute.xlu0 %561
  %565 = vset.pattern.permute.xlu0 0
  %566 = vperm.xlu0 %565, %v556
  %v567 = vpop.permute.xlu0 %566
  %570 = vset.pattern.permute.xlu0 0
  %571 = vperm.xlu0 %570, %v557
  %v572 = vpop.permute.xlu0 %571
  %575 = vset.pattern.permute.xlu0 0
  %576 = vperm.xlu0 %575, %v558
  %v577 = vpop.permute.xlu0 %576
  %v580 = vsel %vm83, %v552, 0
  %v583 = vsel %vm83, %v553, 0
  %585 = vmatprep.subr.bf16.mxu0 0
  %586 = vmatpush1.bf16.msra.mxu0 %v79
  %587 = vmatprep.subr.bf16.mxu0 0
  %588 = vmatpush1.bf16.msra.mxu0 %v80
  %589 = vmatprep.subr.bf16.mxu0 0
  %590 = vmatpush1.bf16.msra.mxu0 0
  %591 = vmatprep.subr.bf16.mxu0 0
  %592 = vmatpush1.bf16.msra.mxu0 0
  %593 = vmatprep.subr.bf16.mxu0 0
  %594 = vmatpush1.bf16.msra.mxu0 0
  %595 = vmatprep.subr.bf16.mxu0 0
  %596 = vmatpush1.bf16.msra.mxu0 0
  %597 = vmatprep.subr.bf16.mxu0 0
  %598 = vmatpush1.bf16.msra.mxu0 0
  %599 = vmatprep.subr.bf16.mxu0 0
  %600 = vmatpush1.bf16.msra.mxu0 0
  %601 = vmatprep.subr.bf16.mxu0 0
  %602 = vmatpush1.bf16.msra.mxu0 0
  %603 = vmatprep.subr.bf16.mxu0 0
  %604 = vmatpush1.bf16.msra.mxu0 0
  %605 = vmatprep.subr.bf16.mxu0 0
  %606 = vmatpush1.bf16.msra.mxu0 0
  %607 = vmatprep.subr.bf16.mxu0 0
  %608 = vmatpush1.bf16.msra.mxu0 0
  %609 = vmatprep.subr.bf16.mxu0 0
  %610 = vmatpush1.bf16.msra.mxu0 0
  %611 = vmatprep.subr.bf16.mxu0 0
  %612 = vmatpush1.bf16.msra.mxu0 0
  %613 = vmatprep.subr.bf16.mxu0 0
  %614 = vmatpush1.bf16.msra.mxu0 0
  %615 = vmatprep.subr.bf16.mxu0 0
  %616 = vmatpush1.bf16.msra.mxu0 0
  %617 = vmatprep.mubr.bf16.mxu0 0
  %618 = vmatmul.mubr.bf16.gmra.mrb[0].mxu0 %v580
  %v619 = vpop.f32.mrb[0].mxu0
  %v620 = vadd.f32 %v562, %v619
  %v621 = vpop.f32.mrb[0].mxu0
  %v622 = vpop.f32.mrb[0].mxu0
  %v623 = vadd.f32 %v567, %v622
  %v624 = vpop.f32.mrb[0].mxu0
  %625 = vmatprep.mubr.bf16.mxu0 0
  %626 = vmatmul.mubr.bf16.gmra.mrb[0].mxu0 %v583
  %v627 = vpop.f32.mrb[0].mxu0
  %v628 = vadd.f32 %v572, %v627
  %v629 = vpop.f32.mrb[0].mxu0
  %v630 = vpop.f32.mrb[0].mxu0
  %v631 = vadd.f32 %v577, %v630
  %v632 = vpop.f32.mrb[0].mxu0
  %633 = vdwg.mxu0
  %v634 = vmax.f32 %v535, %v620
  %v635 = vmax.f32 %v536, %v623
  %v636 = vmax.f32 %v537, %v628
  %v637 = vmax.f32 %v538, %v631
  %s638 = scalar_lea.vmem %s1, 96
  %v639 = vld [vmem:[%s638] sm:$0xf]
  %v640 = vld [vmem:[%s638 + $0x4] sm:$0xf]
  %v641 = vld [vmem:[%s638 + $0x8] sm:$0xf]
  %v642 = vld [vmem:[%s638 + $0xc] sm:$0xf]
  %v643 = vunpack.c.l.bf16 %v639
  %v644 = vunpack.c.l.bf16 %v640
  %v645 = vunpack.c.l.bf16 %v641
  %v646 = vunpack.c.l.bf16 %v642
  %v647 = vmul.f32 %v25, %v643
  %v648 = vmul.f32 %v26, %v644
  %v649 = vmul.f32 %v27, %v645
  %v650 = vmul.f32 %v28, %v646
  %v651 = vpack.c.bf16 %v648, %v647
  %v652 = vpack.c.bf16 %v650, %v649
  %s653 = scalar_lea.vmem %s3, 192
  %v654 = vld [vmem:[%s653] sm:$0xff]
  %v655 = vld [vmem:[%s653 + $0x8] sm:$0xff]
  %v656 = vld [vmem:[%s653 + $0x10] sm:$0xff]
  %v657 = vld [vmem:[%s653 + $0x18] sm:$0xff]
  %659 = vset.pattern.permute.xlu0 0
  %660 = vperm.xlu0 %659, %v654
  %v661 = vpop.permute.xlu0 %660
  %664 = vset.pattern.permute.xlu0 0
  %665 = vperm.xlu0 %664, %v655
  %v666 = vpop.permute.xlu0 %665
  %669 = vset.pattern.permute.xlu0 0
  %670 = vperm.xlu0 %669, %v656
  %v671 = vpop.permute.xlu0 %670
  %674 = vset.pattern.permute.xlu0 0
  %675 = vperm.xlu0 %674, %v657
  %v676 = vpop.permute.xlu0 %675
  %v679 = vsel %vm83, %v651, 0
  %v682 = vsel %vm83, %v652, 0
  %684 = vmatprep.subr.bf16.mxu0 0
  %685 = vmatpush1.bf16.msra.mxu0 %v79
  %686 = vmatprep.subr.bf16.mxu0 0
  %687 = vmatpush1.bf16.msra.mxu0 %v80
  %688 = vmatprep.subr.bf16.mxu0 0
  %689 = vmatpush1.bf16.msra.mxu0 0
  %690 = vmatprep.subr.bf16.mxu0 0
  %691 = vmatpush1.bf16.msra.mxu0 0
  %692 = vmatprep.subr.bf16.mxu0 0
  %693 = vmatpush1.bf16.msra.mxu0 0
  %694 = vmatprep.subr.bf16.mxu0 0
  %695 = vmatpush1.bf16.msra.mxu0 0
  %696 = vmatprep.subr.bf16.mxu0 0
  %697 = vmatpush1.bf16.msra.mxu0 0
  %698 = vmatprep.subr.bf16.mxu0 0
  %699 = vmatpush1.bf16.msra.mxu0 0
  %700 = vmatprep.subr.bf16.mxu0 0
  %701 = vmatpush1.bf16.msra.mxu0 0
  %702 = vmatprep.subr.bf16.mxu0 0
  %703 = vmatpush1.bf16.msra.mxu0 0
  %704 = vmatprep.subr.bf16.mxu0 0
  %705 = vmatpush1.bf16.msra.mxu0 0
  %706 = vmatprep.subr.bf16.mxu0 0
  %707 = vmatpush1.bf16.msra.mxu0 0
  %708 = vmatprep.subr.bf16.mxu0 0
  %709 = vmatpush1.bf16.msra.mxu0 0
  %710 = vmatprep.subr.bf16.mxu0 0
  %711 = vmatpush1.bf16.msra.mxu0 0
  %712 = vmatprep.subr.bf16.mxu0 0
  %713 = vmatpush1.bf16.msra.mxu0 0
  %714 = vmatprep.subr.bf16.mxu0 0
  %715 = vmatpush1.bf16.msra.mxu0 0
  %716 = vmatprep.mubr.bf16.mxu0 0
  %717 = vmatmul.mubr.bf16.gmra.mrb[0].mxu0 %v679
  %v718 = vpop.f32.mrb[0].mxu0
  %v719 = vadd.f32 %v661, %v718
  %v720 = vpop.f32.mrb[0].mxu0
  %v721 = vpop.f32.mrb[0].mxu0
  %v722 = vadd.f32 %v666, %v721
  %v723 = vpop.f32.mrb[0].mxu0
  %724 = vmatprep.mubr.bf16.mxu0 0
  %725 = vmatmul.mubr.bf16.gmra.mrb[0].mxu0 %v682
  %v726 = vpop.f32.mrb[0].mxu0
  %v727 = vadd.f32 %v671, %v726
  %v728 = vpop.f32.mrb[0].mxu0
  %v729 = vpop.f32.mrb[0].mxu0
  %v730 = vadd.f32 %v676, %v729
  %v731 = vpop.f32.mrb[0].mxu0
  %732 = vdwg.mxu0
  %v733 = vmax.f32 %v634, %v719
  %v734 = vmax.f32 %v635, %v722
  %v735 = vmax.f32 %v636, %v727
  %v736 = vmax.f32 %v637, %v730
  %v737 = vsub.f32 %v125, %v733
  %v738 = vsub.f32 %v128, %v734
  %v739 = vsub.f32 %v133, %v735
  %v740 = vsub.f32 %v136, %v736
  %v741 = vmul.f32 %v737, 1.442695
  %v742 = vpow.pop %v741
  %v743 = vmul.f32 %v738, 1.442695
  %v744 = vpow.pop %v743
  %v745 = vmul.f32 %v739, 1.442695
  %v746 = vpow.pop %v745
  %v747 = vmul.f32 %v740, 1.442695
  %v748 = vpow.pop %v747
  %v749 = vadd.f32 %v742, 0.0
  %v750 = vadd.f32 %v744, 0.0
  %v751 = vadd.f32 %v746, 0.0
  %v752 = vadd.f32 %v748, 0.0
  %v753 = vld [vmem:[%s2] sm:$0xf]
  %v754 = vld [vmem:[%s2 + $0x4] sm:$0xf]
  %v755 = vld [vmem:[%s2 + $0x8] sm:$0xf]
  %v756 = vld [vmem:[%s2 + $0xc] sm:$0xf]
  %v757 = vunpack.c.l.bf16 %v753
  %v758 = vunpack.c.l.bf16 %v754
  %v759 = vunpack.c.l.bf16 %v755
  %v760 = vunpack.c.l.bf16 %v756
  %v761 = vmul.f32 %v742, %v757
  %v762 = vmul.f32 %v744, %v758
  %v763 = vmul.f32 %v746, %v759
  %v764 = vmul.f32 %v748, %v760
  %v765 = vadd.f32 %v761, 0.0
  %v766 = vadd.f32 %v762, 0.0
  %v767 = vadd.f32 %v763, 0.0
  %v768 = vadd.f32 %v764, 0.0
  %v769 = vsub.f32 %v224, %v733
  %v770 = vsub.f32 %v227, %v734
  %v771 = vsub.f32 %v232, %v735
  %v772 = vsub.f32 %v235, %v736
  %v773 = vmul.f32 %v769, 1.442695
  %v774 = vpow.pop %v773
  %v775 = vmul.f32 %v770, 1.442695
  %v776 = vpow.pop %v775
  %v777 = vmul.f32 %v771, 1.442695
  %v778 = vpow.pop %v777
  %v779 = vmul.f32 %v772, 1.442695
  %v780 = vpow.pop %v779
  %v781 = vadd.f32 %v749, %v774
  %v782 = vadd.f32 %v750, %v776
  %v783 = vadd.f32 %v751, %v778
  %v784 = vadd.f32 %v752, %v780
  %s785 = scalar_lea.vmem %s2, 16
  %v786 = vld [vmem:[%s785] sm:$0xf]
  %v787 = vld [vmem:[%s785 + $0x4] sm:$0xf]
  %v788 = vld [vmem:[%s785 + $0x8] sm:$0xf]
  %v789 = vld [vmem:[%s785 + $0xc] sm:$0xf]
  %v790 = vunpack.c.l.bf16 %v786
  %v791 = vunpack.c.l.bf16 %v787
  %v792 = vunpack.c.l.bf16 %v788
  %v793 = vunpack.c.l.bf16 %v789
  %v794 = vmul.f32 %v774, %v790
  %v795 = vmul.f32 %v776, %v791
  %v796 = vmul.f32 %v778, %v792
  %v797 = vmul.f32 %v780, %v793
  %v798 = vadd.f32 %v765, %v794
  %v799 = vadd.f32 %v766, %v795
  %v800 = vadd.f32 %v767, %v796
  %v801 = vadd.f32 %v768, %v797
  %v802 = vsub.f32 %v323, %v733
  %v803 = vsub.f32 %v326, %v734
  %v804 = vsub.f32 %v331, %v735
  %v805 = vsub.f32 %v334, %v736
  %v806 = vmul.f32 %v802, 1.442695
  %v807 = vpow.pop %v806
  %v808 = vmul.f32 %v803, 1.442695
  %v809 = vpow.pop %v808
  %v810 = vmul.f32 %v804, 1.442695
  %v811 = vpow.pop %v810
  %v812 = vmul.f32 %v805, 1.442695
  %v813 = vpow.pop %v812
  %v814 = vadd.f32 %v781, %v807
  %v815 = vadd.f32 %v782, %v809
  %v816 = vadd.f32 %v783, %v811
  %v817 = vadd.f32 %v784, %v813
  %s818 = scalar_lea.vmem %s2, 32
  %v819 = vld [vmem:[%s818] sm:$0xf]
  %v820 = vld [vmem:[%s818 + $0x4] sm:$0xf]
  %v821 = vld [vmem:[%s818 + $0x8] sm:$0xf]
  %v822 = vld [vmem:[%s818 + $0xc] sm:$0xf]
  %v823 = vunpack.c.l.bf16 %v819
  %v824 = vunpack.c.l.bf16 %v820
  %v825 = vunpack.c.l.bf16 %v821
  %v826 = vunpack.c.l.bf16 %v822
  %v827 = vmul.f32 %v807, %v823
  %v828 = vmul.f32 %v809, %v824
  %v829 = vmul.f32 %v811, %v825
  %v830 = vmul.f32 %v813, %v826
  %v831 = vadd.f32 %v798, %v827
  %v832 = vadd.f32 %v799, %v828
  %v833 = vadd.f32 %v800, %v829
  %v834 = vadd.f32 %v801, %v830
  %v835 = vsub.f32 %v422, %v733
  %v836 = vsub.f32 %v425, %v734
  %v837 = vsub.f32 %v430, %v735
  %v838 = vsub.f32 %v433, %v736
  %v839 = vmul.f32 %v835, 1.442695
  %v840 = vpow.pop %v839
  %v841 = vmul.f32 %v836, 1.442695
  %v842 = vpow.pop %v841
  %v843 = vmul.f32 %v837, 1.442695
  %v844 = vpow.pop %v843
  %v845 = vmul.f32 %v838, 1.442695
  %v846 = vpow.pop %v845
  %v847 = vadd.f32 %v814, %v840
  %v848 = vadd.f32 %v815, %v842
  %v849 = vadd.f32 %v816, %v844
  %v850 = vadd.f32 %v817, %v846
  %s851 = scalar_lea.vmem %s2, 48
  %v852 = vld [vmem:[%s851] sm:$0xf]
  %v853 = vld [vmem:[%s851 + $0x4] sm:$0xf]
  %v854 = vld [vmem:[%s851 + $0x8] sm:$0xf]
  %v855 = vld [vmem:[%s851 + $0xc] sm:$0xf]
  %v856 = vunpack.c.l.bf16 %v852
  %v857 = vunpack.c.l.bf16 %v853
  %v858 = vunpack.c.l.bf16 %v854
  %v859 = vunpack.c.l.bf16 %v855
  %v860 = vmul.f32 %v840, %v856
  %v861 = vmul.f32 %v842, %v857
  %v862 = vmul.f32 %v844, %v858
  %v863 = vmul.f32 %v846, %v859
  %v864 = vadd.f32 %v831, %v860
  %v865 = vadd.f32 %v832, %v861
  %v866 = vadd.f32 %v833, %v862
  %v867 = vadd.f32 %v834, %v863
  %v868 = vsub.f32 %v521, %v733
  %v869 = vsub.f32 %v524, %v734
  %v870 = vsub.f32 %v529, %v735
  %v871 = vsub.f32 %v532, %v736
  %v872 = vmul.f32 %v868, 1.442695
  %v873 = vpow.pop %v872
  %v874 = vmul.f32 %v869, 1.442695
  %v875 = vpow.pop %v874
  %v876 = vmul.f32 %v870, 1.442695
  %v877 = vpow.pop %v876
  %v878 = vmul.f32 %v871, 1.442695
  %v879 = vpow.pop %v878
  %v880 = vadd.f32 %v847, %v873
  %v881 = vadd.f32 %v848, %v875
  %v882 = vadd.f32 %v849, %v877
  %v883 = vadd.f32 %v850, %v879
  %s884 = scalar_lea.vmem %s2, 64
  %v885 = vld [vmem:[%s884] sm:$0xf]
  %v886 = vld [vmem:[%s884 + $0x4] sm:$0xf]
  %v887 = vld [vmem:[%s884 + $0x8] sm:$0xf]
  %v888 = vld [vmem:[%s884 + $0xc] sm:$0xf]
  %v889 = vunpack.c.l.bf16 %v885
  %v890 = vunpack.c.l.bf16 %v886
  %v891 = vunpack.c.l.bf16 %v887
  %v892 = vunpack.c.l.bf16 %v888
  %v893 = vmul.f32 %v873, %v889
  %v894 = vmul.f32 %v875, %v890
  %v895 = vmul.f32 %v877, %v891
  %v896 = vmul.f32 %v879, %v892
  %v897 = vadd.f32 %v864, %v893
  %v898 = vadd.f32 %v865, %v894
  %v899 = vadd.f32 %v866, %v895
  %v900 = vadd.f32 %v867, %v896
  %v901 = vsub.f32 %v620, %v733
  %v902 = vsub.f32 %v623, %v734
  %v903 = vsub.f32 %v628, %v735
  %v904 = vsub.f32 %v631, %v736
  %v905 = vmul.f32 %v901, 1.442695
  %v906 = vpow.pop %v905
  %v907 = vmul.f32 %v902, 1.442695
  %v908 = vpow.pop %v907
  %v909 = vmul.f32 %v903, 1.442695
  %v910 = vpow.pop %v909
  %v911 = vmul.f32 %v904, 1.442695
  %v912 = vpow.pop %v911
  %v913 = vadd.f32 %v880, %v906
  %v914 = vadd.f32 %v881, %v908
  %v915 = vadd.f32 %v882, %v910
  %v916 = vadd.f32 %v883, %v912
  %s917 = scalar_lea.vmem %s2, 80
  %v918 = vld [vmem:[%s917] sm:$0xf]
  %v919 = vld [vmem:[%s917 + $0x4] sm:$0xf]
  %v920 = vld [vmem:[%s917 + $0x8] sm:$0xf]
  %v921 = vld [vmem:[%s917 + $0xc] sm:$0xf]
  %v922 = vunpack.c.l.bf16 %v918
  %v923 = vunpack.c.l.bf16 %v919
  %v924 = vunpack.c.l.bf16 %v920
  %v925 = vunpack.c.l.bf16 %v921
  %v926 = vmul.f32 %v906, %v922
  %v927 = vmul.f32 %v908, %v923
  %v928 = vmul.f32 %v910, %v924
  %v929 = vmul.f32 %v912, %v925
  %v930 = vadd.f32 %v897, %v926
  %v931 = vadd.f32 %v898, %v927
  %v932 = vadd.f32 %v899, %v928
  %v933 = vadd.f32 %v900, %v929
  %v934 = vsub.f32 %v719, %v733
  %v935 = vsub.f32 %v722, %v734
  %v936 = vsub.f32 %v727, %v735
  %v937 = vsub.f32 %v730, %v736
  %v938 = vmul.f32 %v934, 1.442695
  %v939 = vpow.pop %v938
  %v940 = vmul.f32 %v935, 1.442695
  %v941 = vpow.pop %v940
  %v942 = vmul.f32 %v936, 1.442695
  %v943 = vpow.pop %v942
  %v944 = vmul.f32 %v937, 1.442695
  %v945 = vpow.pop %v944
  %v946 = vadd.f32 %v913, %v939
  %v947 = vadd.f32 %v914, %v941
  %v948 = vadd.f32 %v915, %v943
  %v949 = vadd.f32 %v916, %v945
  %s950 = scalar_lea.vmem %s2, 96
  %v951 = vld [vmem:[%s950] sm:$0xf]
  %v952 = vld [vmem:[%s950 + $0x4] sm:$0xf]
  %v953 = vld [vmem:[%s950 + $0x8] sm:$0xf]
  %v954 = vld [vmem:[%s950 + $0xc] sm:$0xf]
  %v955 = vunpack.c.l.bf16 %v951
  %v956 = vunpack.c.l.bf16 %v952
  %v957 = vunpack.c.l.bf16 %v953
  %v958 = vunpack.c.l.bf16 %v954
  %v959 = vmul.f32 %v939, %v955
  %v960 = vmul.f32 %v941, %v956
  %v961 = vmul.f32 %v943, %v957
  %v962 = vmul.f32 %v945, %v958
  %v963 = vadd.f32 %v930, %v959
  %v964 = vadd.f32 %v931, %v960
  %v965 = vadd.f32 %v932, %v961
  %v966 = vadd.f32 %v933, %v962
  %v967 = vrcp.pop %v946
  %v968 = vrcp.pop %v947
  %v969 = vrcp.pop %v948
  %v970 = vrcp.pop %v949
  %v971 = vmul.f32 %v963, %v967
  %v972 = vmul.f32 %v964, %v968
  %v973 = vmul.f32 %v965, %v969
  %v974 = vmul.f32 %v966, %v970
  %v975 = vpack.c.bf16 %v972, %v971
  %v976 = vpack.c.bf16 %v974, %v973
  %v979 = vunpack.c.l.b16 %v975
  %v980 = vunpack.c.h.b16 %v975
  %v981 = vunpack.c.l.b16 %v976
  %v982 = vunpack.c.h.b16 %v976
  %v983 = vpack.c.b16 %v979, %v979
  %v984 = vpack.c.b16 %v980, %v980
  %v985 = vpack.c.b16 %v981, %v981
  %v986 = vpack.c.b16 %v982, %v982
  %vm991 = vcmask 257024
  %992 = vst.msk [vmem:[%s5] sm:$0xf] %vm991, %v983
  %993 = vst.msk [vmem:[%s5 + $0x4] sm:$0xf] %vm991, %v984
  %994 = vst.msk [vmem:[%s5 + $0x8] sm:$0xf] %vm991, %v985
  %995 = vst.msk [vmem:[%s5 + $0xc] sm:$0xf] %vm991, %v986
  // Predicated region
  $region22: #{transformer_block_pallas.4} parent=0 // pred_check
    _
  $region23: #{transformer_block_pallas.4} parent=0 // pred_check_branch
    %997 = sbr.rel (0) target = $region25
  $region24: #{transformer_block_pallas.4} parent=0 // pred_region
    _
  $region25: #{transformer_block_pallas.4} parent=0 // pred_fallthru
    _
  // Predicated region
  $region26: #{transformer_block_pallas.4} parent=0 // pred_check
    _
  $region27: #{transformer_block_pallas.4} parent=0 // pred_check_branch
    %999 = sbr.rel (0) target = $region29
  $region28: #{transformer_block_pallas.4} parent=0 // pred_region
    _
  $region29: #{transformer_block_pallas.4} parent=0 // pred_fallthru
    _

</llo_original>
